<compile_context>
chip_gen: v7x
topology: tpu7x:2x2x1
jax: 0.10.0
libtpu: 0.0.40
codegen_flags: <defaults>
</compile_context>

<pallas_src>
import functools

import jax
import jax.numpy as jnp
from jax import lax
from jax.experimental import pallas as pl
from jax.experimental.pallas import tpu as pltpu

_MIB = 1024 * 1024


def _round_up(x, m):
    return ((x + m - 1) // m) * m


def _vmem_capacity_bytes():
    """Per-core VMEM capacity; conservative fallback if the query fails."""
    try:
        return int(pltpu.get_tpu_info().vmem_capacity_bytes)
    except Exception:
        return 64 * _MIB  # v7x per-TensorCore size (smallest current gen)


def _gpg_kernel(y_ref, p_ref, invd_ref, theta_ref, err_ref,
                *, ref_node, num_layers, use_mxu):
    Y = y_ref[...]                 # (bB, N, N) f32
    p = p_ref[...]                 # (bB, N)    f32
    inv_diag = invd_ref[...]       # (bB, N)    f32
    _, N = p.shape
    n_err = num_layers + 1

    # Pin the slack (reference) node angle to zero; (1, N), broadcast at use.
    not_ref = lax.broadcasted_iota(jnp.int32, (1, N), 1) != ref_node

    if use_mxu:
        # Large N: stream Y rows through the MXU against a small stationary
        # theta column. Precision pinned for strict f32 parity with torch.
        def matvec(theta):
            yt = lax.dot_general(
                Y, theta[:, :, None],
                dimension_numbers=(((2,), (1,)), ((0,), (0,))),
                preferred_element_type=jnp.float32,
                precision=lax.Precision.HIGHEST)
            return jnp.squeeze(yt, axis=-1)                  # (bB, N)
    else:
        # Small N: VPU broadcast-multiply + lane reduction. No MXU weight
        # pushes; co-issues with the next block's Y DMA.
        def matvec(theta):
            return jnp.sum(Y * theta[:, None, :], axis=-1)   # (bB, N)

    errs = []

    # ---- input layer (no NN): theta_i = p_i / Y_ii ; theta[ref] = 0 ----
    theta = jnp.where(not_ref, p * inv_diag, 0.0)
    nodal = p - matvec(theta)          # reused as the next Jacobi residual
    errs.append(jnp.sum(jnp.abs(nodal)))

    # ---- intermediate Jacobi layers (unrolled; num_layers is static/small) ----
    for _ in range(num_layers):
        theta = jnp.where(not_ref, theta + nodal * inv_diag, 0.0)
        nodal = p - matvec(theta)
        errs.append(jnp.sum(jnp.abs(nodal)))

    theta_ref[...] = theta

    # Pack this block's L+1 |error| partial sums into one lane-dense row and
    # store once (no per-layer 1-element masked stores).
    lane = lax.broadcasted_iota(jnp.int32, (1, 1, n_err), 2)
    err_row = jnp.zeros((1, 1, n_err), jnp.float32)
    for k, e in enumerate(errs):
        err_row = jnp.where(lane == k, e, err_row)
    err_ref[...] = err_row


def gpg_forward(ybus, p, *, ref_node=0, num_gnn_layers=10,
                batch_block=None, mxu_min_n=257):
    """Pallas implementation of GPGmodel_without_NN.forward.

    Returns (theta, errors) where errors is a length-(L+1) float32 vector of the
    per-layer summed |nodal error| (the torch module returns the same values as
    a Python list of scalar tensors).
    """
    ybus = ybus.astype(jnp.float32)
    p = p.astype(jnp.float32)
    B, N, _ = ybus.shape
    n_err = num_gnn_layers + 1

    per_sample_y = N * N * 4
    vmem_total = _vmem_capacity_bytes()

    # ---- batch block selection (generation-aware) ----
    if batch_block is None:
        # Double-buffered Y working-set target:
        #   v5e/v6e (128 MiB VMEM): ~48 MiB ; v7x (64 MiB per TC): ~24 MiB.
        y_budget = 48 * _MIB if vmem_total >= 96 * _MIB else 24 * _MIB
        cap = max(8, ((y_budget // (2 * per_sample_y)) // 8) * 8)
        batch_block = min(cap, _round_up(B, 8))
        # With plenty of work, keep >= ~8 grid steps (pipeline steady state,
        # both v7x TensorCores busy).
        if B >= 64:
            target = max(8, _round_up(-(-B // 8), 8))
            batch_block = min(batch_block, target)
    else:
        # Sublane axis of every (batch_block, N) block must be a multiple of 8.
        batch_block = max(8, _round_up(int(batch_block), 8))

    # ---- pad the batch instead of shrinking the block for awkward B ----
    B_pad = _round_up(B, batch_block)
    num_blocks = B_pad // batch_block
    if num_blocks > 1 and num_blocks % 2 == 1:
        num_blocks += 1                 # even split across v7x TensorCores
        B_pad = num_blocks * batch_block

    if B_pad != B:
        pad = B_pad - B
        # Identity Y / zero p for padded samples -> theta = 0, nodal error = 0.
        ybus = jnp.concatenate(
            [ybus, jnp.broadcast_to(jnp.eye(N, dtype=jnp.float32), (pad, N, N))],
            axis=0)
        p = jnp.concatenate([p, jnp.zeros((pad, N), jnp.float32)], axis=0)

    # Precompute 1/diag(Y) once (avoids per-layer divides in the kernel).
    diag = jnp.diagonal(ybus, axis1=-2, axis2=-1)             # (B_pad, N)
    inv_diag = 1.0 / diag

    # ---- explicit scoped-VMEM limit: double-buffered Y + temps + margin ----
    y_block_bytes = batch_block * per_sample_y
    vmem_limit = 4 * y_block_bytes + 8 * _MIB
    vmem_limit = max(vmem_limit, 32 * _MIB)
    vmem_limit = min(vmem_limit, int(0.9 * vmem_total))

    kernel = functools.partial(
        _gpg_kernel,
        ref_node=int(ref_node),
        num_layers=int(num_gnn_layers),
        use_mxu=(N >= mxu_min_n),
    )

    theta_pad, err = pl.pallas_call(
        kernel,
        out_shape=(
            jax.ShapeDtypeStruct((B_pad, N), jnp.float32),
            jax.ShapeDtypeStruct((num_blocks, 1, n_err), jnp.float32),
        ),
        grid_spec=pltpu.PrefetchScalarGridSpec(
            num_scalar_prefetch=0,
            grid=(num_blocks,),
            in_specs=[
                pl.BlockSpec((batch_block, N, N), lambda b: (b, 0, 0)),
                pl.BlockSpec((batch_block, N), lambda b: (b, 0)),
                pl.BlockSpec((batch_block, N), lambda b: (b, 0)),
            ],
            out_specs=(
                pl.BlockSpec((batch_block, N), lambda b: (b, 0)),
                pl.BlockSpec((1, 1, n_err), lambda b: (b, 0, 0)),
            ),
        ),
        compiler_params=pltpu.CompilerParams(
            dimension_semantics=("parallel",),
            vmem_limit_bytes=int(vmem_limit),
        ),
    )(ybus, p, inv_diag)

    theta = theta_pad[:B]
    errors = jnp.sum(err, axis=(0, 1))                        # (n_err,)
    return theta, errors


def gpg_forward_ref(ybus, p, *, ref_node=0, num_gnn_layers=10):
    """Pure-JAX reference for correctness checking (f32, HIGHEST precision)."""
    diag = jnp.diagonal(ybus, axis1=-2, axis2=-1)
    not_ref = jnp.arange(p.shape[1])[None, :] != ref_node
    mv = lambda th: jnp.einsum("bij,bj->bi", ybus, th,
                               precision=lax.Precision.HIGHEST)
    theta = jnp.where(not_ref, p / diag, 0.0)
    errors = [jnp.sum(jnp.abs(p - mv(theta)))]
    for _ in range(num_gnn_layers):
        resid = p - mv(theta)
        theta = jnp.where(not_ref, theta + resid / diag, 0.0)
        errors.append(jnp.sum(jnp.abs(p - mv(theta))))
    return theta, jnp.stack(errors)


if __name__ == "__main__":
    B, N = 20, 16
    ref_node = 0
    num_gnn_layers = 10

    key = jax.random.PRNGKey(0)
    k1, k2 = jax.random.split(key)

    # Deterministic synthetic grid: symmetric positive line susceptances,
    # Y = diag(sum_j b_ij) - b; balanced injections p.
    b = jax.random.uniform(k1, (B, N, N), jnp.float32, minval=0.5, maxval=2.0)
    b = 0.5 * (b + jnp.swapaxes(b, -1, -2))
    b = b * (1.0 - jnp.eye(N, dtype=jnp.float32))
    deg = jnp.sum(b, axis=-1)                                   # (B, N)
    ybus = jnp.eye(N, dtype=jnp.float32)[None] * deg[:, :, None] - b
    p = jax.random.normal(k2, (B, N), jnp.float32)
    p = p - jnp.mean(p, axis=-1, keepdims=True)

    theta_expected, errors_expected = gpg_forward_ref(
        ybus, p, ref_node=ref_node, num_gnn_layers=num_gnn_layers)

    # Explicit small block: exercises batch padding (20 -> 32), the even-block
    # nudge, and the multi-step 'parallel' batch grid.
    theta, errors = gpg_forward(
        ybus, p, ref_node=ref_node, num_gnn_layers=num_gnn_layers,
        batch_block=8)
    theta = jax.block_until_ready(theta)
    errors = jax.block_until_ready(errors)
    assert theta.shape == (B, N) and errors.shape == (num_gnn_layers + 1,)
    assert jnp.allclose(theta, theta_expected, rtol=1e-3, atol=1e-3)
    assert jnp.allclose(errors, errors_expected, rtol=1e-3, atol=1e-3)

    # Auto block selection (generation-aware VMEM budget; single block here).
    theta2, errors2 = gpg_forward(
        ybus, p, ref_node=ref_node, num_gnn_layers=num_gnn_layers)
    theta2 = jax.block_until_ready(theta2)
    errors2 = jax.block_until_ready(errors2)
    assert jnp.allclose(theta2, theta_expected, rtol=1e-3, atol=1e-3)
    assert jnp.allclose(errors2, errors_expected, rtol=1e-3, atol=1e-3)

    print("KERNEL_OK")
</pallas_src>

<mosaic_0001>
module attributes {stable_mosaic.version = 11 : i64} {
  func.func @_gpg_kernel(%arg0: i32, %arg1: memref<8x16x16xf32, #tpu.memory_space<vmem>>, %arg2: memref<8x16xf32, #tpu.memory_space<vmem>>, %arg3: memref<8x16xf32, #tpu.memory_space<vmem>>, %arg4: memref<8x16xf32, #tpu.memory_space<vmem>>, %arg5: memref<1x1x11xf32, #tpu.memory_space<vmem>>) attributes {dimension_semantics = [#tpu.dimension_semantics<parallel>], iteration_bounds = array<i64: 4>, scalar_prefetch = 0 : i64, scratch_operands = 0 : i64, tpu.core_type = #tpu.core_type<tc>, window_params = [{transform_indices = @transform_0, window_bounds = array<i64: 8, 16, 16>}, {transform_indices = @transform_1, window_bounds = array<i64: 8, 16>}, {transform_indices = @transform_2, window_bounds = array<i64: 8, 16>}, {transform_indices = @transform_3, window_bounds = array<i64: 8, 16>}, {transform_indices = @transform_4, window_bounds = array<i64: 1, 1, 11>}]} {
    %c0 = arith.constant 0 : index
    %c0_0 = arith.constant 0 : index
    %c0_1 = arith.constant 0 : index
    %0 = vector.load %arg1[%c0, %c0_0, %c0_1] : memref<8x16x16xf32, #tpu.memory_space<vmem>>, vector<8x16x16xf32>
    %c0_2 = arith.constant 0 : index
    %c0_3 = arith.constant 0 : index
    %1 = vector.load %arg2[%c0_2, %c0_3] : memref<8x16xf32, #tpu.memory_space<vmem>>, vector<8x16xf32>
    %c0_4 = arith.constant 0 : index
    %c0_5 = arith.constant 0 : index
    %2 = vector.load %arg3[%c0_4, %c0_5] : memref<8x16xf32, #tpu.memory_space<vmem>>, vector<8x16xf32>
    %3 = tpu.iota {dimensions = array<i32: 1>} : vector<1x16xi32>
    %c0_i32 = arith.constant 0 : i32
    %4 = vector.broadcast %c0_i32 : i32 to vector<1x16xi32>
    %5 = arith.cmpi ne, %3, %4 : vector<1x16xi32>
    %6 = arith.mulf %1, %2 : vector<8x16xf32>
    %cst = arith.constant 0.000000e+00 : f32
    %7 = vector.shape_cast %5 : vector<1x16xi1> to vector<1x16xi1>
    %8 = vector.broadcast %7 : vector<1x16xi1> to vector<8x16xi1>
    %9 = vector.broadcast %cst : f32 to vector<8x16xf32>
    %10 = arith.select %8, %6, %9 : vector<8x16xi1>, vector<8x16xf32>
    %11 = vector.shape_cast %10 : vector<8x16xf32> to vector<8x1x16xf32>
    %12 = vector.broadcast %11 : vector<8x1x16xf32> to vector<8x16x16xf32>
    %13 = arith.mulf %0, %12 : vector<8x16x16xf32>
    %cst_6 = arith.constant dense<0.000000e+00> : vector<8x16xf32>
    %14 = vector.multi_reduction <add>, %13, %cst_6 [2] : vector<8x16x16xf32> to vector<8x16xf32>
    %15 = arith.subf %1, %14 : vector<8x16xf32>
    %16 = math.absf %15 : vector<8x16xf32>
    %17 = vector.shape_cast %16 : vector<8x16xf32> to vector<1x8x16xf32>
    %cst_7 = arith.constant dense<0.000000e+00> : vector<1xf32>
    %18 = vector.multi_reduction <add>, %17, %cst_7 [1, 2] : vector<1x8x16xf32> to vector<1xf32>
    %19 = vector.shape_cast %18 : vector<1xf32> to vector<1x1x1xf32>
    %20 = vector.extract %19[0, 0, 0] : f32 from vector<1x1x1xf32>
    %21 = arith.mulf %15, %2 : vector<8x16xf32>
    %22 = arith.addf %10, %21 : vector<8x16xf32>
    %cst_8 = arith.constant 0.000000e+00 : f32
    %23 = vector.shape_cast %5 : vector<1x16xi1> to vector<1x16xi1>
    %24 = vector.broadcast %23 : vector<1x16xi1> to vector<8x16xi1>
    %25 = vector.broadcast %cst_8 : f32 to vector<8x16xf32>
    %26 = arith.select %24, %22, %25 : vector<8x16xi1>, vector<8x16xf32>
    %27 = vector.shape_cast %26 : vector<8x16xf32> to vector<8x1x16xf32>
    %28 = vector.broadcast %27 : vector<8x1x16xf32> to vector<8x16x16xf32>
    %29 = arith.mulf %0, %28 : vector<8x16x16xf32>
    %cst_9 = arith.constant dense<0.000000e+00> : vector<8x16xf32>
    %30 = vector.multi_reduction <add>, %29, %cst_9 [2] : vector<8x16x16xf32> to vector<8x16xf32>
    %31 = arith.subf %1, %30 : vector<8x16xf32>
    %32 = math.absf %31 : vector<8x16xf32>
    %33 = vector.shape_cast %32 : vector<8x16xf32> to vector<1x8x16xf32>
    %cst_10 = arith.constant dense<0.000000e+00> : vector<1xf32>
    %34 = vector.multi_reduction <add>, %33, %cst_10 [1, 2] : vector<1x8x16xf32> to vector<1xf32>
    %35 = vector.shape_cast %34 : vector<1xf32> to vector<1x1x1xf32>
    %36 = vector.extract %35[0, 0, 0] : f32 from vector<1x1x1xf32>
    %37 = arith.mulf %31, %2 : vector<8x16xf32>
    %38 = arith.addf %26, %37 : vector<8x16xf32>
    %cst_11 = arith.constant 0.000000e+00 : f32
    %39 = vector.shape_cast %5 : vector<1x16xi1> to vector<1x16xi1>
    %40 = vector.broadcast %39 : vector<1x16xi1> to vector<8x16xi1>
    %41 = vector.broadcast %cst_11 : f32 to vector<8x16xf32>
    %42 = arith.select %40, %38, %41 : vector<8x16xi1>, vector<8x16xf32>
    %43 = vector.shape_cast %42 : vector<8x16xf32> to vector<8x1x16xf32>
    %44 = vector.broadcast %43 : vector<8x1x16xf32> to vector<8x16x16xf32>
    %45 = arith.mulf %0, %44 : vector<8x16x16xf32>
    %cst_12 = arith.constant dense<0.000000e+00> : vector<8x16xf32>
    %46 = vector.multi_reduction <add>, %45, %cst_12 [2] : vector<8x16x16xf32> to vector<8x16xf32>
    %47 = arith.subf %1, %46 : vector<8x16xf32>
    %48 = math.absf %47 : vector<8x16xf32>
    %49 = vector.shape_cast %48 : vector<8x16xf32> to vector<1x8x16xf32>
    %cst_13 = arith.constant dense<0.000000e+00> : vector<1xf32>
    %50 = vector.multi_reduction <add>, %49, %cst_13 [1, 2] : vector<1x8x16xf32> to vector<1xf32>
    %51 = vector.shape_cast %50 : vector<1xf32> to vector<1x1x1xf32>
    %52 = vector.extract %51[0, 0, 0] : f32 from vector<1x1x1xf32>
    %53 = arith.mulf %47, %2 : vector<8x16xf32>
    %54 = arith.addf %42, %53 : vector<8x16xf32>
    %cst_14 = arith.constant 0.000000e+00 : f32
    %55 = vector.shape_cast %5 : vector<1x16xi1> to vector<1x16xi1>
    %56 = vector.broadcast %55 : vector<1x16xi1> to vector<8x16xi1>
    %57 = vector.broadcast %cst_14 : f32 to vector<8x16xf32>
    %58 = arith.select %56, %54, %57 : vector<8x16xi1>, vector<8x16xf32>
    %59 = vector.shape_cast %58 : vector<8x16xf32> to vector<8x1x16xf32>
    %60 = vector.broadcast %59 : vector<8x1x16xf32> to vector<8x16x16xf32>
    %61 = arith.mulf %0, %60 : vector<8x16x16xf32>
    %cst_15 = arith.constant dense<0.000000e+00> : vector<8x16xf32>
    %62 = vector.multi_reduction <add>, %61, %cst_15 [2] : vector<8x16x16xf32> to vector<8x16xf32>
    %63 = arith.subf %1, %62 : vector<8x16xf32>
    %64 = math.absf %63 : vector<8x16xf32>
    %65 = vector.shape_cast %64 : vector<8x16xf32> to vector<1x8x16xf32>
    %cst_16 = arith.constant dense<0.000000e+00> : vector<1xf32>
    %66 = vector.multi_reduction <add>, %65, %cst_16 [1, 2] : vector<1x8x16xf32> to vector<1xf32>
    %67 = vector.shape_cast %66 : vector<1xf32> to vector<1x1x1xf32>
    %68 = vector.extract %67[0, 0, 0] : f32 from vector<1x1x1xf32>
    %69 = arith.mulf %63, %2 : vector<8x16xf32>
    %70 = arith.addf %58, %69 : vector<8x16xf32>
    %cst_17 = arith.constant 0.000000e+00 : f32
    %71 = vector.shape_cast %5 : vector<1x16xi1> to vector<1x16xi1>
    %72 = vector.broadcast %71 : vector<1x16xi1> to vector<8x16xi1>
    %73 = vector.broadcast %cst_17 : f32 to vector<8x16xf32>
    %74 = arith.select %72, %70, %73 : vector<8x16xi1>, vector<8x16xf32>
    %75 = vector.shape_cast %74 : vector<8x16xf32> to vector<8x1x16xf32>
    %76 = vector.broadcast %75 : vector<8x1x16xf32> to vector<8x16x16xf32>
    %77 = arith.mulf %0, %76 : vector<8x16x16xf32>
    %cst_18 = arith.constant dense<0.000000e+00> : vector<8x16xf32>
    %78 = vector.multi_reduction <add>, %77, %cst_18 [2] : vector<8x16x16xf32> to vector<8x16xf32>
    %79 = arith.subf %1, %78 : vector<8x16xf32>
    %80 = math.absf %79 : vector<8x16xf32>
    %81 = vector.shape_cast %80 : vector<8x16xf32> to vector<1x8x16xf32>
    %cst_19 = arith.constant dense<0.000000e+00> : vector<1xf32>
    %82 = vector.multi_reduction <add>, %81, %cst_19 [1, 2] : vector<1x8x16xf32> to vector<1xf32>
    %83 = vector.shape_cast %82 : vector<1xf32> to vector<1x1x1xf32>
    %84 = vector.extract %83[0, 0, 0] : f32 from vector<1x1x1xf32>
    %85 = arith.mulf %79, %2 : vector<8x16xf32>
    %86 = arith.addf %74, %85 : vector<8x16xf32>
    %cst_20 = arith.constant 0.000000e+00 : f32
    %87 = vector.shape_cast %5 : vector<1x16xi1> to vector<1x16xi1>
    %88 = vector.broadcast %87 : vector<1x16xi1> to vector<8x16xi1>
    %89 = vector.broadcast %cst_20 : f32 to vector<8x16xf32>
    %90 = arith.select %88, %86, %89 : vector<8x16xi1>, vector<8x16xf32>
    %91 = vector.shape_cast %90 : vector<8x16xf32> to vector<8x1x16xf32>
    %92 = vector.broadcast %91 : vector<8x1x16xf32> to vector<8x16x16xf32>
    %93 = arith.mulf %0, %92 : vector<8x16x16xf32>
    %cst_21 = arith.constant dense<0.000000e+00> : vector<8x16xf32>
    %94 = vector.multi_reduction <add>, %93, %cst_21 [2] : vector<8x16x16xf32> to vector<8x16xf32>
    %95 = arith.subf %1, %94 : vector<8x16xf32>
    %96 = math.absf %95 : vector<8x16xf32>
    %97 = vector.shape_cast %96 : vector<8x16xf32> to vector<1x8x16xf32>
    %cst_22 = arith.constant dense<0.000000e+00> : vector<1xf32>
    %98 = vector.multi_reduction <add>, %97, %cst_22 [1, 2] : vector<1x8x16xf32> to vector<1xf32>
    %99 = vector.shape_cast %98 : vector<1xf32> to vector<1x1x1xf32>
    %100 = vector.extract %99[0, 0, 0] : f32 from vector<1x1x1xf32>
    %101 = arith.mulf %95, %2 : vector<8x16xf32>
    %102 = arith.addf %90, %101 : vector<8x16xf32>
    %cst_23 = arith.constant 0.000000e+00 : f32
    %103 = vector.shape_cast %5 : vector<1x16xi1> to vector<1x16xi1>
    %104 = vector.broadcast %103 : vector<1x16xi1> to vector<8x16xi1>
    %105 = vector.broadcast %cst_23 : f32 to vector<8x16xf32>
    %106 = arith.select %104, %102, %105 : vector<8x16xi1>, vector<8x16xf32>
    %107 = vector.shape_cast %106 : vector<8x16xf32> to vector<8x1x16xf32>
    %108 = vector.broadcast %107 : vector<8x1x16xf32> to vector<8x16x16xf32>
    %109 = arith.mulf %0, %108 : vector<8x16x16xf32>
    %cst_24 = arith.constant dense<0.000000e+00> : vector<8x16xf32>
    %110 = vector.multi_reduction <add>, %109, %cst_24 [2] : vector<8x16x16xf32> to vector<8x16xf32>
    %111 = arith.subf %1, %110 : vector<8x16xf32>
    %112 = math.absf %111 : vector<8x16xf32>
    %113 = vector.shape_cast %112 : vector<8x16xf32> to vector<1x8x16xf32>
    %cst_25 = arith.constant dense<0.000000e+00> : vector<1xf32>
    %114 = vector.multi_reduction <add>, %113, %cst_25 [1, 2] : vector<1x8x16xf32> to vector<1xf32>
    %115 = vector.shape_cast %114 : vector<1xf32> to vector<1x1x1xf32>
    %116 = vector.extract %115[0, 0, 0] : f32 from vector<1x1x1xf32>
    %117 = arith.mulf %111, %2 : vector<8x16xf32>
    %118 = arith.addf %106, %117 : vector<8x16xf32>
    %cst_26 = arith.constant 0.000000e+00 : f32
    %119 = vector.shape_cast %5 : vector<1x16xi1> to vector<1x16xi1>
    %120 = vector.broadcast %119 : vector<1x16xi1> to vector<8x16xi1>
    %121 = vector.broadcast %cst_26 : f32 to vector<8x16xf32>
    %122 = arith.select %120, %118, %121 : vector<8x16xi1>, vector<8x16xf32>
    %123 = vector.shape_cast %122 : vector<8x16xf32> to vector<8x1x16xf32>
    %124 = vector.broadcast %123 : vector<8x1x16xf32> to vector<8x16x16xf32>
    %125 = arith.mulf %0, %124 : vector<8x16x16xf32>
    %cst_27 = arith.constant dense<0.000000e+00> : vector<8x16xf32>
    %126 = vector.multi_reduction <add>, %125, %cst_27 [2] : vector<8x16x16xf32> to vector<8x16xf32>
    %127 = arith.subf %1, %126 : vector<8x16xf32>
    %128 = math.absf %127 : vector<8x16xf32>
    %129 = vector.shape_cast %128 : vector<8x16xf32> to vector<1x8x16xf32>
    %cst_28 = arith.constant dense<0.000000e+00> : vector<1xf32>
    %130 = vector.multi_reduction <add>, %129, %cst_28 [1, 2] : vector<1x8x16xf32> to vector<1xf32>
    %131 = vector.shape_cast %130 : vector<1xf32> to vector<1x1x1xf32>
    %132 = vector.extract %131[0, 0, 0] : f32 from vector<1x1x1xf32>
    %133 = arith.mulf %127, %2 : vector<8x16xf32>
    %134 = arith.addf %122, %133 : vector<8x16xf32>
    %cst_29 = arith.constant 0.000000e+00 : f32
    %135 = vector.shape_cast %5 : vector<1x16xi1> to vector<1x16xi1>
    %136 = vector.broadcast %135 : vector<1x16xi1> to vector<8x16xi1>
    %137 = vector.broadcast %cst_29 : f32 to vector<8x16xf32>
    %138 = arith.select %136, %134, %137 : vector<8x16xi1>, vector<8x16xf32>
    %139 = vector.shape_cast %138 : vector<8x16xf32> to vector<8x1x16xf32>
    %140 = vector.broadcast %139 : vector<8x1x16xf32> to vector<8x16x16xf32>
    %141 = arith.mulf %0, %140 : vector<8x16x16xf32>
    %cst_30 = arith.constant dense<0.000000e+00> : vector<8x16xf32>
    %142 = vector.multi_reduction <add>, %141, %cst_30 [2] : vector<8x16x16xf32> to vector<8x16xf32>
    %143 = arith.subf %1, %142 : vector<8x16xf32>
    %144 = math.absf %143 : vector<8x16xf32>
    %145 = vector.shape_cast %144 : vector<8x16xf32> to vector<1x8x16xf32>
    %cst_31 = arith.constant dense<0.000000e+00> : vector<1xf32>
    %146 = vector.multi_reduction <add>, %145, %cst_31 [1, 2] : vector<1x8x16xf32> to vector<1xf32>
    %147 = vector.shape_cast %146 : vector<1xf32> to vector<1x1x1xf32>
    %148 = vector.extract %147[0, 0, 0] : f32 from vector<1x1x1xf32>
    %149 = arith.mulf %143, %2 : vector<8x16xf32>
    %150 = arith.addf %138, %149 : vector<8x16xf32>
    %cst_32 = arith.constant 0.000000e+00 : f32
    %151 = vector.shape_cast %5 : vector<1x16xi1> to vector<1x16xi1>
    %152 = vector.broadcast %151 : vector<1x16xi1> to vector<8x16xi1>
    %153 = vector.broadcast %cst_32 : f32 to vector<8x16xf32>
    %154 = arith.select %152, %150, %153 : vector<8x16xi1>, vector<8x16xf32>
    %155 = vector.shape_cast %154 : vector<8x16xf32> to vector<8x1x16xf32>
    %156 = vector.broadcast %155 : vector<8x1x16xf32> to vector<8x16x16xf32>
    %157 = arith.mulf %0, %156 : vector<8x16x16xf32>
    %cst_33 = arith.constant dense<0.000000e+00> : vector<8x16xf32>
    %158 = vector.multi_reduction <add>, %157, %cst_33 [2] : vector<8x16x16xf32> to vector<8x16xf32>
    %159 = arith.subf %1, %158 : vector<8x16xf32>
    %160 = math.absf %159 : vector<8x16xf32>
    %161 = vector.shape_cast %160 : vector<8x16xf32> to vector<1x8x16xf32>
    %cst_34 = arith.constant dense<0.000000e+00> : vector<1xf32>
    %162 = vector.multi_reduction <add>, %161, %cst_34 [1, 2] : vector<1x8x16xf32> to vector<1xf32>
    %163 = vector.shape_cast %162 : vector<1xf32> to vector<1x1x1xf32>
    %164 = vector.extract %163[0, 0, 0] : f32 from vector<1x1x1xf32>
    %165 = arith.mulf %159, %2 : vector<8x16xf32>
    %166 = arith.addf %154, %165 : vector<8x16xf32>
    %cst_35 = arith.constant 0.000000e+00 : f32
    %167 = vector.shape_cast %5 : vector<1x16xi1> to vector<1x16xi1>
    %168 = vector.broadcast %167 : vector<1x16xi1> to vector<8x16xi1>
    %169 = vector.broadcast %cst_35 : f32 to vector<8x16xf32>
    %170 = arith.select %168, %166, %169 : vector<8x16xi1>, vector<8x16xf32>
    %171 = vector.shape_cast %170 : vector<8x16xf32> to vector<8x1x16xf32>
    %172 = vector.broadcast %171 : vector<8x1x16xf32> to vector<8x16x16xf32>
    %173 = arith.mulf %0, %172 : vector<8x16x16xf32>
    %cst_36 = arith.constant dense<0.000000e+00> : vector<8x16xf32>
    %174 = vector.multi_reduction <add>, %173, %cst_36 [2] : vector<8x16x16xf32> to vector<8x16xf32>
    %175 = arith.subf %1, %174 : vector<8x16xf32>
    %176 = math.absf %175 : vector<8x16xf32>
    %177 = vector.shape_cast %176 : vector<8x16xf32> to vector<1x8x16xf32>
    %cst_37 = arith.constant dense<0.000000e+00> : vector<1xf32>
    %178 = vector.multi_reduction <add>, %177, %cst_37 [1, 2] : vector<1x8x16xf32> to vector<1xf32>
    %179 = vector.shape_cast %178 : vector<1xf32> to vector<1x1x1xf32>
    %180 = vector.extract %179[0, 0, 0] : f32 from vector<1x1x1xf32>
    %c0_38 = arith.constant 0 : index
    %c0_39 = arith.constant 0 : index
    %181 = vector.load %arg4[%c0_38, %c0_39] : memref<8x16xf32, #tpu.memory_space<vmem>>, vector<8x16xf32>
    tpu.vector_store %arg4[%c0_38, %c0_39], %170 {strides = array<i32>} : memref<8x16xf32, #tpu.memory_space<vmem>>, vector<8x16xf32>,
    %182 = tpu.iota {dimensions = array<i32: 2>} : vector<1x1x11xi32>
    %cst_40 = arith.constant 0.000000e+00 : f32
    %183 = vector.broadcast %cst_40 : f32 to vector<1x1x11xf32>
    %c0_i32_41 = arith.constant 0 : i32
    %184 = vector.broadcast %c0_i32_41 : i32 to vector<1x1x11xi32>
    %185 = arith.cmpi eq, %182, %184 : vector<1x1x11xi32>
    %186 = vector.broadcast %20 : f32 to vector<1x1x11xf32>
    %187 = arith.select %185, %186, %183 : vector<1x1x11xi1>, vector<1x1x11xf32>
    %c1_i32 = arith.constant 1 : i32
    %188 = vector.broadcast %c1_i32 : i32 to vector<1x1x11xi32>
    %189 = arith.cmpi eq, %182, %188 : vector<1x1x11xi32>
    %190 = vector.broadcast %36 : f32 to vector<1x1x11xf32>
    %191 = arith.select %189, %190, %187 : vector<1x1x11xi1>, vector<1x1x11xf32>
    %c2_i32 = arith.constant 2 : i32
    %192 = vector.broadcast %c2_i32 : i32 to vector<1x1x11xi32>
    %193 = arith.cmpi eq, %182, %192 : vector<1x1x11xi32>
    %194 = vector.broadcast %52 : f32 to vector<1x1x11xf32>
    %195 = arith.select %193, %194, %191 : vector<1x1x11xi1>, vector<1x1x11xf32>
    %c3_i32 = arith.constant 3 : i32
    %196 = vector.broadcast %c3_i32 : i32 to vector<1x1x11xi32>
    %197 = arith.cmpi eq, %182, %196 : vector<1x1x11xi32>
    %198 = vector.broadcast %68 : f32 to vector<1x1x11xf32>
    %199 = arith.select %197, %198, %195 : vector<1x1x11xi1>, vector<1x1x11xf32>
    %c4_i32 = arith.constant 4 : i32
    %200 = vector.broadcast %c4_i32 : i32 to vector<1x1x11xi32>
    %201 = arith.cmpi eq, %182, %200 : vector<1x1x11xi32>
    %202 = vector.broadcast %84 : f32 to vector<1x1x11xf32>
    %203 = arith.select %201, %202, %199 : vector<1x1x11xi1>, vector<1x1x11xf32>
    %c5_i32 = arith.constant 5 : i32
    %204 = vector.broadcast %c5_i32 : i32 to vector<1x1x11xi32>
    %205 = arith.cmpi eq, %182, %204 : vector<1x1x11xi32>
    %206 = vector.broadcast %100 : f32 to vector<1x1x11xf32>
    %207 = arith.select %205, %206, %203 : vector<1x1x11xi1>, vector<1x1x11xf32>
    %c6_i32 = arith.constant 6 : i32
    %208 = vector.broadcast %c6_i32 : i32 to vector<1x1x11xi32>
    %209 = arith.cmpi eq, %182, %208 : vector<1x1x11xi32>
    %210 = vector.broadcast %116 : f32 to vector<1x1x11xf32>
    %211 = arith.select %209, %210, %207 : vector<1x1x11xi1>, vector<1x1x11xf32>
    %c7_i32 = arith.constant 7 : i32
    %212 = vector.broadcast %c7_i32 : i32 to vector<1x1x11xi32>
    %213 = arith.cmpi eq, %182, %212 : vector<1x1x11xi32>
    %214 = vector.broadcast %132 : f32 to vector<1x1x11xf32>
    %215 = arith.select %213, %214, %211 : vector<1x1x11xi1>, vector<1x1x11xf32>
    %c8_i32 = arith.constant 8 : i32
    %216 = vector.broadcast %c8_i32 : i32 to vector<1x1x11xi32>
    %217 = arith.cmpi eq, %182, %216 : vector<1x1x11xi32>
    %218 = vector.broadcast %148 : f32 to vector<1x1x11xf32>
    %219 = arith.select %217, %218, %215 : vector<1x1x11xi1>, vector<1x1x11xf32>
    %c9_i32 = arith.constant 9 : i32
    %220 = vector.broadcast %c9_i32 : i32 to vector<1x1x11xi32>
    %221 = arith.cmpi eq, %182, %220 : vector<1x1x11xi32>
    %222 = vector.broadcast %164 : f32 to vector<1x1x11xf32>
    %223 = arith.select %221, %222, %219 : vector<1x1x11xi1>, vector<1x1x11xf32>
    %c10_i32 = arith.constant 10 : i32
    %224 = vector.broadcast %c10_i32 : i32 to vector<1x1x11xi32>
    %225 = arith.cmpi eq, %182, %224 : vector<1x1x11xi32>
    %226 = vector.broadcast %180 : f32 to vector<1x1x11xf32>
    %227 = arith.select %225, %226, %223 : vector<1x1x11xi1>, vector<1x1x11xf32>
    %c0_42 = arith.constant 0 : index
    %c0_43 = arith.constant 0 : index
    %c0_44 = arith.constant 0 : index
    %228 = vector.load %arg5[%c0_42, %c0_43, %c0_44] : memref<1x1x11xf32, #tpu.memory_space<vmem>>, vector<1x1x11xf32>
    tpu.vector_store %arg5[%c0_42, %c0_43, %c0_44], %227 {strides = array<i32>} : memref<1x1x11xf32, #tpu.memory_space<vmem>>, vector<1x1x11xf32>,
    return
  }
  func.func @transform_0(%arg0: i32) -> (i32, i32, i32) {
    %c0_i32 = arith.constant 0 : i32
    %c0_i32_0 = arith.constant 0 : i32
    %c0_i32_1 = arith.constant 0 : i32
    return %arg0, %c0_i32, %c0_i32_0 : i32, i32, i32
  }
  func.func @transform_1(%arg0: i32) -> (i32, i32) {
    %c0_i32 = arith.constant 0 : i32
    %c0_i32_0 = arith.constant 0 : i32
    return %arg0, %c0_i32 : i32, i32
  }
  func.func @transform_2(%arg0: i32) -> (i32, i32) {
    %c0_i32 = arith.constant 0 : i32
    %c0_i32_0 = arith.constant 0 : i32
    return %arg0, %c0_i32 : i32, i32
  }
  func.func @transform_3(%arg0: i32) -> (i32, i32) {
    %c0_i32 = arith.constant 0 : i32
    %c0_i32_0 = arith.constant 0 : i32
    return %arg0, %c0_i32 : i32, i32
  }
  func.func @transform_4(%arg0: i32) -> (i32, i32, i32) {
    %c0_i32 = arith.constant 0 : i32
    %c0_i32_0 = arith.constant 0 : i32
    %c0_i32_1 = arith.constant 0 : i32
    return %arg0, %c0_i32, %c0_i32_0 : i32, i32, i32
  }
}

</mosaic_0001>

<llo_original>
// kernel: tpu_custom_call.1
$region0: #{tpu_custom_call.1}
  #allocation0 [shape = 'u32[]', space=smem, size = 0x4, offset = 0x4, fixed_abs, tag = 'smem constant byte address 0x4 - core index']
  #allocation1 [shape = 'u32[144,128]{1,0:T(1,128)}', space=vmem, size = 0x12000, scoped, tag = 'internal scratch']
  %s0 = inlined_call_operand.vmem [shape: f32[32,16,16], index: 0, kind: input, shape index: {}]
  %s1 = inlined_call_operand.vmem [shape: f32[32,16], index: 1, kind: input, shape index: {}]
  %s2 = inlined_call_operand.vmem [shape: f32[32,16], index: 2, kind: input, shape index: {}]
  %s3 = inlined_call_operand.vmem [shape: f32[32,16], index: 3, kind: output, shape index: {0}]
  %s4 = inlined_call_operand.hbm [shape: f32[4,1,11], index: 4, kind: output, shape index: {1}]
  %5 = xla_tuple %s3, %s4
  %s6 = sld [smem:[#allocation0]]
  $region53: #{tpu_custom_call.1} parent=0
    _
  %s8 = ssub.s32 1, %s6
  %s9 = scalar_select 0, %s8, %s6
  $region1: #{tpu_custom_call.1} parent=0
    #allocation2 [shape = 'u8[1024]{0}', space=vmem, size = 0x400, scoped, tag = 'output window, operand 1']
    #allocation3 [shape = 's32[2]{0}', space=sflag, size = 0x8, scoped, tag = 'scoped memory for tpu_custom_call.1']
    %10 = vsyncpa [#allocation3], 0
    %s11 = scalar_lea.sflag [#allocation3], 1
    %12 = vsyncpa %s11, 0
    loop: start=0, step=1, limit=6
    $region2: #{tpu_custom_call.1} parent=1 // loop_pre_header
      _
    $region3: #{tpu_custom_call.1} parent=1 // loop_header
      %s14 = sphi 0, %s18
      %p15 = scmp.ge.s32.totalorder %s14, 6
      %s24 = sphi 0, %s26
      %s27 = sphi 0, %s24
      %s28 = sphi 0, %s27
      %s44 = sphi 0, %s28
      %s50 = sphi 0, %s52
      %s53 = sphi 0, %s50
      %s54 = sphi 0, %s53
      %s70 = sphi 0, %s54
      %s76 = sphi 0, %s78
      %s79 = sphi 0, %s76
      %s80 = sphi 0, %s79
      %s96 = sphi 0, %s80
      %s102 = sphi 0, %s104
      %s105 = sphi 0, %s102
      %s106 = sphi 0, %s105
      %s122 = sphi 0, %s106
      %s128 = sphi 0, %s130
      %s131 = sphi 0, %s128
      %s132 = sphi 0, %s131
      %s148 = sphi 0, %s132
    $region4: #{tpu_custom_call.1} parent=1 // loop_header_branch
      %17 = sbr.rel (%p15) target = $region8
    $region5: #{tpu_custom_call.1} parent=1 // loop_body
      %s19 = ssub.s32 %s14, 1
      %s20 = ssub.s32 %s14, 2
      %s21 = sadd.s32 %s14, 1
      %s22 = ssub.s32 %s14, %s21
      %p23 = scmp.eq.s32.totalorder %s22, 0
      %s25 = sadd.s32 %s24, 1
      %s26 = scalar_select %p23, %s24, %s25
      %p29 = pneg %p23
      %p30 = scmp.eq.s32.totalorder %s14, 3
      %p31 = por %p29, %p30
      %p32 = scmp.ne.s32.totalorder %s24, %s27
      %p33 = scmp.eq.s32.totalorder %s14, 0
      %p34 = por %p32, %p33
      %p35 = scmp.ne.s32.totalorder %s24, %s27
      %p36 = scmp.eq.s32.totalorder %s19, 3
      %p37 = por %p35, %p36
      %p38 = scmp.ne.s32.totalorder %s27, %s28
      %p39 = scmp.eq.s32.totalorder %s19, 0
      %p40 = por %p38, %p39
      %p41 = scmp.ne.s32.totalorder %s27, %s28
      %p42 = scmp.eq.s32.totalorder %s20, 3
      %p43 = por %p41, %p42
      %p45 = scmp.ne.s32.totalorder %s28, %s44
      %p46 = scmp.eq.s32.totalorder %s20, 0
      %p47 = por %p45, %p46
      %s48 = ssub.s32 %s14, %s21
      %p49 = scmp.eq.s32.totalorder %s48, 0
      %s51 = sadd.s32 %s50, 1
      %s52 = scalar_select %p49, %s50, %s51
      %p55 = pneg %p49
      %p56 = scmp.eq.s32.totalorder %s14, 3
      %p57 = por %p55, %p56
      %p58 = scmp.ne.s32.totalorder %s50, %s53
      %p59 = scmp.eq.s32.totalorder %s14, 0
      %p60 = por %p58, %p59
      %p61 = scmp.ne.s32.totalorder %s50, %s53
      %p62 = scmp.eq.s32.totalorder %s19, 3
      %p63 = por %p61, %p62
      %p64 = scmp.ne.s32.totalorder %s53, %s54
      %p65 = scmp.eq.s32.totalorder %s19, 0
      %p66 = por %p64, %p65
      %p67 = scmp.ne.s32.totalorder %s53, %s54
      %p68 = scmp.eq.s32.totalorder %s20, 3
      %p69 = por %p67, %p68
      %p71 = scmp.ne.s32.totalorder %s54, %s70
      %p72 = scmp.eq.s32.totalorder %s20, 0
      %p73 = por %p71, %p72
      %s74 = ssub.s32 %s14, %s21
      %p75 = scmp.eq.s32.totalorder %s74, 0
      %s77 = sadd.s32 %s76, 1
      %s78 = scalar_select %p75, %s76, %s77
      %p81 = pneg %p75
      %p82 = scmp.eq.s32.totalorder %s14, 3
      %p83 = por %p81, %p82
      %p84 = scmp.ne.s32.totalorder %s76, %s79
      %p85 = scmp.eq.s32.totalorder %s14, 0
      %p86 = por %p84, %p85
      %p87 = scmp.ne.s32.totalorder %s76, %s79
      %p88 = scmp.eq.s32.totalorder %s19, 3
      %p89 = por %p87, %p88
      %p90 = scmp.ne.s32.totalorder %s79, %s80
      %p91 = scmp.eq.s32.totalorder %s19, 0
      %p92 = por %p90, %p91
      %p93 = scmp.ne.s32.totalorder %s79, %s80
      %p94 = scmp.eq.s32.totalorder %s20, 3
      %p95 = por %p93, %p94
      %p97 = scmp.ne.s32.totalorder %s80, %s96
      %p98 = scmp.eq.s32.totalorder %s20, 0
      %p99 = por %p97, %p98
      %s100 = ssub.s32 %s14, %s21
      %p101 = scmp.eq.s32.totalorder %s100, 0
      %s103 = sadd.s32 %s102, 1
      %s104 = scalar_select %p101, %s102, %s103
      %p107 = pneg %p101
      %p108 = scmp.eq.s32.totalorder %s14, 3
      %p109 = por %p107, %p108
      %p110 = scmp.ne.s32.totalorder %s102, %s105
      %p111 = scmp.eq.s32.totalorder %s14, 0
      %p112 = por %p110, %p111
      %p113 = scmp.ne.s32.totalorder %s102, %s105
      %p114 = scmp.eq.s32.totalorder %s19, 3
      %p115 = por %p113, %p114
      %p116 = scmp.ne.s32.totalorder %s105, %s106
      %p117 = scmp.eq.s32.totalorder %s19, 0
      %p118 = por %p116, %p117
      %p119 = scmp.ne.s32.totalorder %s105, %s106
      %p120 = scmp.eq.s32.totalorder %s20, 3
      %p121 = por %p119, %p120
      %p123 = scmp.ne.s32.totalorder %s106, %s122
      %p124 = scmp.eq.s32.totalorder %s20, 0
      %p125 = por %p123, %p124
      %s126 = ssub.s32 %s14, %s21
      %p127 = scmp.eq.s32.totalorder %s126, 0
      %s129 = sadd.s32 %s128, 1
      %s130 = scalar_select %p127, %s128, %s129
      %p133 = pneg %p127
      %p134 = scmp.eq.s32.totalorder %s14, 3
      %p135 = por %p133, %p134
      %p136 = scmp.ne.s32.totalorder %s128, %s131
      %p137 = scmp.eq.s32.totalorder %s14, 0
      %p138 = por %p136, %p137
      %p139 = scmp.ne.s32.totalorder %s128, %s131
      %p140 = scmp.eq.s32.totalorder %s19, 3
      %p141 = por %p139, %p140
      %p142 = scmp.ne.s32.totalorder %s131, %s132
      %p143 = scmp.eq.s32.totalorder %s19, 0
      %p144 = por %p142, %p143
      %p145 = scmp.ne.s32.totalorder %s131, %s132
      %p146 = scmp.eq.s32.totalorder %s20, 3
      %p147 = por %p145, %p146
      %p149 = scmp.ne.s32.totalorder %s132, %s148
      %p150 = scmp.eq.s32.totalorder %s20, 0
      %p151 = por %p149, %p150
      %p152 = scmp.le.s32.totalorder 1, %s14
      %p153 = scmp.lt.s32.totalorder %s14, 5
      %p154 = pnand %p152, %p153
      %p155 = pneg %p154
      // Predicated region
      $region9: #{tpu_custom_call.1} parent=5 // pred_check
        _
      $region10: #{tpu_custom_call.1} parent=5 // pred_check_branch
        %157 = sbr.rel (%p154) target = $region12
      $region11: #{tpu_custom_call.1} parent=5 // pred_region
        %s158 = ssub.s32 %s14, 1
      $region12: #{tpu_custom_call.1} parent=5 // pred_fallthru
        _
      %p159 = scmp.lt.s32.totalorder %s14, 4
      // Predicated region
      $region13: #{tpu_custom_call.1} parent=5 // pred_check
        %p160 = pneg %p159
      $region14: #{tpu_custom_call.1} parent=5 // pred_check_branch
        %162 = sbr.rel (%p160) target = $region16
      $region15: #{tpu_custom_call.1} parent=5 // pred_region
        // Predicated region
        $region17: #{tpu_custom_call.1} parent=15 // pred_check
          %p163 = pneg %p34
        $region18: #{tpu_custom_call.1} parent=15 // pred_check_branch
          %165 = sbr.rel (%p163) target = $region20
        $region19: #{tpu_custom_call.1} parent=15 // pred_region
          %s166 = smul.u32 8, %s14
          %p167 = scmp.lt.s32.totalorder %s166, 31
          %s168 = scalar_select %p167, %s166, 31
          %s169 = smul.addr %s168, 2
          %s170 = smul.addr %s169, 8
          %s171 = scalar_lea.vmem %s0, %s170
          %s172 = smul.u32 8, %s14
        $region20: #{tpu_custom_call.1} parent=15 // pred_fallthru
          _
        // Predicated region
        $region21: #{tpu_custom_call.1} parent=15 // pred_check
          %p173 = pneg %p60
        $region22: #{tpu_custom_call.1} parent=15 // pred_check_branch
          %175 = sbr.rel (%p173) target = $region24
        $region23: #{tpu_custom_call.1} parent=15 // pred_region
          %p176 = scmp.lt.s32.totalorder %s14, 3
          %s177 = scalar_select %p176, %s14, 3
          %s178 = smul.addr %s177, 8
          %s179 = scalar_lea.vmem %s1, %s178
        $region24: #{tpu_custom_call.1} parent=15 // pred_fallthru
          _
        // Predicated region
        $region25: #{tpu_custom_call.1} parent=15 // pred_check
          %p180 = pneg %p86
        $region26: #{tpu_custom_call.1} parent=15 // pred_check_branch
          %182 = sbr.rel (%p180) target = $region28
        $region27: #{tpu_custom_call.1} parent=15 // pred_region
          %p183 = scmp.lt.s32.totalorder %s14, 3
          %s184 = scalar_select %p183, %s14, 3
          %s185 = smul.addr %s184, 8
          %s186 = scalar_lea.vmem %s2, %s185
        $region28: #{tpu_custom_call.1} parent=15 // pred_fallthru
          _
      $region16: #{tpu_custom_call.1} parent=5 // pred_fallthru
        _
      %p187 = scmp.le.s32.totalorder 1, %s14
      %p188 = scmp.lt.s32.totalorder %s14, 5
      %p189 = pnand %p187, %p188
      %p190 = pneg %p189
      // Predicated region
      $region29: #{tpu_custom_call.1} parent=5 // pred_check
        _
      $region30: #{tpu_custom_call.1} parent=5 // pred_check_branch
        %192 = sbr.rel (%p189) target = $region32
      $region31: #{tpu_custom_call.1} parent=5 // pred_region
        %s193 = ssub.s32 %s14, 1
        %s194 = smul.u32 8, %s19
        %p195 = scmp.lt.s32.totalorder %s194, 31
        %s196 = scalar_select %p195, %s194, 31
        %s197 = smul.addr %s196, 2
        %s198 = smul.addr %s197, 8
        %s199 = scalar_lea.vmem %s0, %s198
        %p200 = pneg %p40
        %p201 = pneg %p37
        %p202 = scmp.lt.s32.totalorder %s19, 3
        %s203 = scalar_select %p202, %s19, 3
        %s204 = smul.addr %s203, 8
        %s205 = scalar_lea.vmem %s1, %s204
        %p206 = pneg %p66
        %p207 = pneg %p63
        %p208 = scmp.lt.s32.totalorder %s19, 3
        %s209 = scalar_select %p208, %s19, 3
        %s210 = smul.addr %s209, 8
        %s211 = scalar_lea.vmem %s2, %s210
        %p212 = pneg %p92
        %p213 = pneg %p89
        %p214 = pneg %p118
        %p215 = pneg %p115
        %p216 = scmp.lt.s32.totalorder %s19, 3
        %s217 = scalar_select %p216, %s19, 3
        %s218 = smul.addr %s217, 8
        %s219 = scalar_lea.vmem %s3, %s218
        %p220 = pneg %p144
        %p221 = pneg %p141
        %s222 = sand.u32 %s131, 1
        %s223 = scalar_lea.sflag [#allocation3], %s222
        %s224 = sand.u32 %s131, 1
        %s225 = scalar_lea.vmem [#allocation2], %s224
        %s226 = smul.u32 8, %s19
        %p227 = scmp.lt.s32.totalorder %s226, 31
        %s228 = scalar_select %p227, %s226, 31
        %s229 = smul.addr %s228, 2
        %s230 = smul.addr %s229, 8
        %s231 = scalar_lea.vmem %s0, %s230
        %s232 = smul.u32 8, %s19
        %p233 = scmp.lt.s32.totalorder %s19, 3
        %s234 = scalar_select %p233, %s19, 3
        %s235 = smul.addr %s234, 8
        %s236 = scalar_lea.vmem %s1, %s235
        %p237 = scmp.lt.s32.totalorder %s19, 3
        %s238 = scalar_select %p237, %s19, 3
        %s239 = smul.addr %s238, 8
        %s240 = scalar_lea.vmem %s2, %s239
        %p241 = scmp.lt.s32.totalorder %s19, 3
        %s242 = scalar_select %p241, %s19, 3
        %s243 = smul.addr %s242, 8
        %s244 = scalar_lea.vmem %s3, %s243
        %v245 = vld [vmem:[%s231] sm:$0xff]
        %v246 = vld [vmem:[%s231 + $0x8] sm:$0xff]
        %v247 = vld [vmem:[%s231 + $0x10] sm:$0xff]
        %v248 = vld [vmem:[%s231 + $0x18] sm:$0xff]
        %v249 = vld [vmem:[%s231 + $0x20] sm:$0xff]
        %v250 = vld [vmem:[%s231 + $0x28] sm:$0xff]
        %v251 = vld [vmem:[%s231 + $0x30] sm:$0xff]
        %v252 = vld [vmem:[%s231 + $0x38] sm:$0xff]
        %v253 = vld [vmem:[%s231 + $0x40] sm:$0xff]
        %v254 = vld [vmem:[%s231 + $0x48] sm:$0xff]
        %v255 = vld [vmem:[%s231 + $0x50] sm:$0xff]
        %v256 = vld [vmem:[%s231 + $0x58] sm:$0xff]
        %v257 = vld [vmem:[%s231 + $0x60] sm:$0xff]
        %v258 = vld [vmem:[%s231 + $0x68] sm:$0xff]
        %v259 = vld [vmem:[%s231 + $0x70] sm:$0xff]
        %v260 = vld [vmem:[%s231 + $0x78] sm:$0xff]
        %v261 = vld [vmem:[%s236] sm:$0xff]
        %v262 = vld [vmem:[%s240] sm:$0xff]
        %v263 = vlaneseq
        %v264 = vand.u32 %v263, 127
        %vm265 = vcmp.ne.s32.totalorder %v264, 0
        %v266 = vmul.f32 %v261, %v262
        %v267 = vsel %vm265, 1, 0
        %vm268 = vcmp.eq.s32.totalorder %v267, 1
        %v269 = vsel %vm268, %v266, 0.0
        %v271 = vcombine.high %v269, %v269
        %v273 = vunpack.c.l.s4 1966171168
        %v274 = vunpack.c.0.s8 %v273
        %v275 = vlaneseq
        %v276 = vshrl.u32 %v275, 7
        %v277 = vsub.s32 %v274, %v276
        %v278 = vrot.slane %v269, %v277
        %v280 = vunpack.c.l.s4 1966171168
        %v281 = vunpack.c.0.s8 %v280
        %v282 = vlaneseq
        %v283 = vshrl.u32 %v282, 7
        %v284 = vsub.s32 %v281, %v283
        %v285 = vrot.slane %v271, %v284
        %v286 = vcombine.high %v278, %v278
        %v287 = vcombine.high %v285, %v285
        %v289 = vunpack.c.l.s4 1966171168
        %v290 = vunpack.c.0.s8 %v289
        %v291 = vlaneseq
        %v292 = vshrl.u32 %v291, 7
        %v293 = vsub.s32 %v290, %v292
        %v294 = vrot.slane %v278, %v293
        %v296 = vunpack.c.l.s4 1966171168
        %v297 = vunpack.c.0.s8 %v296
        %v298 = vlaneseq
        %v299 = vshrl.u32 %v298, 7
        %v300 = vsub.s32 %v297, %v299
        %v301 = vrot.slane %v285, %v300
        %v303 = vunpack.c.l.s4 1966171168
        %v304 = vunpack.c.0.s8 %v303
        %v305 = vlaneseq
        %v306 = vshrl.u32 %v305, 7
        %v307 = vsub.s32 %v304, %v306
        %v308 = vrot.slane %v286, %v307
        %v310 = vunpack.c.l.s4 1966171168
        %v311 = vunpack.c.0.s8 %v310
        %v312 = vlaneseq
        %v313 = vshrl.u32 %v312, 7
        %v314 = vsub.s32 %v311, %v313
        %v315 = vrot.slane %v287, %v314
        %v316 = vcombine.high %v294, %v294
        %v317 = vcombine.high %v301, %v301
        %v318 = vcombine.high %v308, %v308
        %v319 = vcombine.high %v315, %v315
        %v320 = vlaneseq
        %v321 = vshrl.u32 %v320, 7
        %v322 = vsub.s32 0, %v321
        %v323 = vrot.slane %v294, %v322
        %v324 = vlaneseq
        %v325 = vshrl.u32 %v324, 7
        %v326 = vsub.s32 0, %v325
        %v327 = vrot.slane %v308, %v326
        %v328 = vlaneseq
        %v329 = vshrl.u32 %v328, 7
        %v330 = vsub.s32 0, %v329
        %v331 = vrot.slane %v316, %v330
        %v332 = vlaneseq
        %v333 = vshrl.u32 %v332, 7
        %v334 = vsub.s32 0, %v333
        %v335 = vrot.slane %v318, %v334
        %v336 = vlaneseq
        %v337 = vshrl.u32 %v336, 7
        %v338 = vsub.s32 0, %v337
        %v339 = vrot.slane %v301, %v338
        %v340 = vlaneseq
        %v341 = vshrl.u32 %v340, 7
        %v342 = vsub.s32 0, %v341
        %v343 = vrot.slane %v315, %v342
        %v344 = vlaneseq
        %v345 = vshrl.u32 %v344, 7
        %v346 = vsub.s32 0, %v345
        %v347 = vrot.slane %v317, %v346
        %v348 = vlaneseq
        %v349 = vshrl.u32 %v348, 7
        %v350 = vsub.s32 0, %v349
        %v351 = vrot.slane %v319, %v350
        %v360 = vmul.f32 %v245, %v323
        %v361 = vmul.f32 %v246, %v323
        %v362 = vmul.f32 %v247, %v327
        %v363 = vmul.f32 %v248, %v327
        %v364 = vmul.f32 %v249, %v331
        %v365 = vmul.f32 %v250, %v331
        %v366 = vmul.f32 %v251, %v335
        %v367 = vmul.f32 %v252, %v335
        %v368 = vmul.f32 %v253, %v339
        %v369 = vmul.f32 %v254, %v339
        %v370 = vmul.f32 %v255, %v343
        %v371 = vmul.f32 %v256, %v343
        %v372 = vmul.f32 %v257, %v347
        %v373 = vmul.f32 %v258, %v347
        %v374 = vmul.f32 %v259, %v351
        %v375 = vmul.f32 %v260, %v351
        %vm376 = vcmask 130048
        %v377 = vsel %vm376, %v360, 0.0
        %378 = vadd.xlane.f32.xlu0 %v377
        %v379 = vpop.xlane.xlu0 %378
        %v380 = vsel %vm376, %v361, 0.0
        %381 = vadd.xlane.f32.xlu0 %v380
        %v382 = vpop.xlane.xlu0 %381
        %v383 = vsel %vm376, %v362, 0.0
        %384 = vadd.xlane.f32.xlu0 %v383
        %v385 = vpop.xlane.xlu0 %384
        %v386 = vsel %vm376, %v363, 0.0
        %387 = vadd.xlane.f32.xlu0 %v386
        %v388 = vpop.xlane.xlu0 %387
        %v389 = vsel %vm376, %v364, 0.0
        %390 = vadd.xlane.f32.xlu0 %v389
        %v391 = vpop.xlane.xlu0 %390
        %v392 = vsel %vm376, %v365, 0.0
        %393 = vadd.xlane.f32.xlu0 %v392
        %v394 = vpop.xlane.xlu0 %393
        %v395 = vsel %vm376, %v366, 0.0
        %396 = vadd.xlane.f32.xlu0 %v395
        %v397 = vpop.xlane.xlu0 %396
        %v398 = vsel %vm376, %v367, 0.0
        %399 = vadd.xlane.f32.xlu0 %v398
        %v400 = vpop.xlane.xlu0 %399
        %v401 = vsel %vm376, %v368, 0.0
        %402 = vadd.xlane.f32.xlu0 %v401
        %v403 = vpop.xlane.xlu0 %402
        %v404 = vsel %vm376, %v369, 0.0
        %405 = vadd.xlane.f32.xlu0 %v404
        %v406 = vpop.xlane.xlu0 %405
        %v407 = vsel %vm376, %v370, 0.0
        %408 = vadd.xlane.f32.xlu0 %v407
        %v409 = vpop.xlane.xlu0 %408
        %v410 = vsel %vm376, %v371, 0.0
        %411 = vadd.xlane.f32.xlu0 %v410
        %v412 = vpop.xlane.xlu0 %411
        %v413 = vsel %vm376, %v372, 0.0
        %414 = vadd.xlane.f32.xlu0 %v413
        %v415 = vpop.xlane.xlu0 %414
        %v416 = vsel %vm376, %v373, 0.0
        %417 = vadd.xlane.f32.xlu0 %v416
        %v418 = vpop.xlane.xlu0 %417
        %v419 = vsel %vm376, %v374, 0.0
        %420 = vadd.xlane.f32.xlu0 %v419
        %v421 = vpop.xlane.xlu0 %420
        %v422 = vsel %vm376, %v375, 0.0
        %423 = vadd.xlane.f32.xlu0 %v422
        %v424 = vpop.xlane.xlu0 %423
        %v441 = vlaneseq
        %v442 = vshrl.u32 %v441, 7
        %v443 = vsub.s32 %v264, %v442
        %v444 = vrot.slane %v379, %v443
        %v445 = vadd.s32 %v264, 4294967288
        %v446 = vlaneseq
        %v447 = vshrl.u32 %v446, 7
        %v448 = vsub.s32 %v445, %v447
        %v449 = vrot.slane %v382, %v448
        %vm450 = vcmask 130112
        %v451 = vsel %vm450, %v449, %v444
        %v452 = vlaneseq
        %v453 = vshrl.u32 %v452, 7
        %v454 = vsub.s32 %v264, %v453
        %v455 = vrot.slane %v385, %v454
        %v456 = vlaneseq
        %v457 = vshrl.u32 %v456, 7
        %v458 = vsub.s32 %v445, %v457
        %v459 = vrot.slane %v388, %v458
        %v460 = vsel %vm450, %v459, %v455
        %v461 = vlaneseq
        %v462 = vshrl.u32 %v461, 7
        %v463 = vsub.s32 %v264, %v462
        %v464 = vrot.slane %v391, %v463
        %v465 = vlaneseq
        %v466 = vshrl.u32 %v465, 7
        %v467 = vsub.s32 %v445, %v466
        %v468 = vrot.slane %v394, %v467
        %v469 = vsel %vm450, %v468, %v464
        %v470 = vlaneseq
        %v471 = vshrl.u32 %v470, 7
        %v472 = vsub.s32 %v264, %v471
        %v473 = vrot.slane %v397, %v472
        %v474 = vlaneseq
        %v475 = vshrl.u32 %v474, 7
        %v476 = vsub.s32 %v445, %v475
        %v477 = vrot.slane %v400, %v476
        %v478 = vsel %vm450, %v477, %v473
        %v479 = vlaneseq
        %v480 = vshrl.u32 %v479, 7
        %v481 = vsub.s32 %v264, %v480
        %v482 = vrot.slane %v403, %v481
        %v483 = vlaneseq
        %v484 = vshrl.u32 %v483, 7
        %v485 = vsub.s32 %v445, %v484
        %v486 = vrot.slane %v406, %v485
        %v487 = vsel %vm450, %v486, %v482
        %v488 = vlaneseq
        %v489 = vshrl.u32 %v488, 7
        %v490 = vsub.s32 %v264, %v489
        %v491 = vrot.slane %v409, %v490
        %v492 = vlaneseq
        %v493 = vshrl.u32 %v492, 7
        %v494 = vsub.s32 %v445, %v493
        %v495 = vrot.slane %v412, %v494
        %v496 = vsel %vm450, %v495, %v491
        %v497 = vlaneseq
        %v498 = vshrl.u32 %v497, 7
        %v499 = vsub.s32 %v264, %v498
        %v500 = vrot.slane %v415, %v499
        %v501 = vlaneseq
        %v502 = vshrl.u32 %v501, 7
        %v503 = vsub.s32 %v445, %v502
        %v504 = vrot.slane %v418, %v503
        %v505 = vsel %vm450, %v504, %v500
        %v506 = vlaneseq
        %v507 = vshrl.u32 %v506, 7
        %v508 = vsub.s32 %v264, %v507
        %v509 = vrot.slane %v421, %v508
        %v510 = vlaneseq
        %v511 = vshrl.u32 %v510, 7
        %v512 = vsub.s32 %v445, %v511
        %v513 = vrot.slane %v424, %v512
        %v514 = vsel %vm450, %v513, %v509
        %vm515 = vcmask 1041409
        %v516 = vsel %vm515, %v460, %v451
        %vm517 = vcmask 1042434
        %v518 = vsel %vm517, %v469, %v516
        %vm519 = vcmask 1043459
        %v520 = vsel %vm519, %v478, %v518
        %vm521 = vcmask 1044484
        %v522 = vsel %vm521, %v487, %v520
        %vm523 = vcmask 1045509
        %v524 = vsel %vm523, %v496, %v522
        %vm525 = vcmask 1046534
        %v526 = vsel %vm525, %v505, %v524
        %vm527 = vcmask 1047559
        %v528 = vsel %vm527, %v514, %v526
        %v530 = vsub.f32 %v261, %v528
        %v531 = vand.u32 2147483647, %v530
        %v532 = vsel %vm376, %v531, 0.0
        %533 = vadd.xlane.f32.xlu0 %v532
        %v534 = vpop.xlane.xlu0 %533
        %v535 = vrot.slane %v534, 4
        %v536 = vadd.f32 %v534, %v535
        %v537 = vrot.slane %v536, 2
        %v538 = vadd.f32 %v536, %v537
        %v539 = vrot.slane %v538, 1
        %v540 = vadd.f32 %v538, %v539
        %s541 = vtos %v540
        %v542 = vmul.f32 %v530, %v262
        %v543 = vadd.f32 %v269, %v542
        %v544 = vsel %vm268, %v543, 0.0
        %v546 = vcombine.high %v544, %v544
        %v548 = vunpack.c.l.s4 1966171168
        %v549 = vunpack.c.0.s8 %v548
        %v550 = vlaneseq
        %v551 = vshrl.u32 %v550, 7
        %v552 = vsub.s32 %v549, %v551
        %v553 = vrot.slane %v544, %v552
        %v555 = vunpack.c.l.s4 1966171168
        %v556 = vunpack.c.0.s8 %v555
        %v557 = vlaneseq
        %v558 = vshrl.u32 %v557, 7
        %v559 = vsub.s32 %v556, %v558
        %v560 = vrot.slane %v546, %v559
        %v561 = vcombine.high %v553, %v553
        %v562 = vcombine.high %v560, %v560
        %v564 = vunpack.c.l.s4 1966171168
        %v565 = vunpack.c.0.s8 %v564
        %v566 = vlaneseq
        %v567 = vshrl.u32 %v566, 7
        %v568 = vsub.s32 %v565, %v567
        %v569 = vrot.slane %v553, %v568
        %v571 = vunpack.c.l.s4 1966171168
        %v572 = vunpack.c.0.s8 %v571
        %v573 = vlaneseq
        %v574 = vshrl.u32 %v573, 7
        %v575 = vsub.s32 %v572, %v574
        %v576 = vrot.slane %v560, %v575
        %v578 = vunpack.c.l.s4 1966171168
        %v579 = vunpack.c.0.s8 %v578
        %v580 = vlaneseq
        %v581 = vshrl.u32 %v580, 7
        %v582 = vsub.s32 %v579, %v581
        %v583 = vrot.slane %v561, %v582
        %v585 = vunpack.c.l.s4 1966171168
        %v586 = vunpack.c.0.s8 %v585
        %v587 = vlaneseq
        %v588 = vshrl.u32 %v587, 7
        %v589 = vsub.s32 %v586, %v588
        %v590 = vrot.slane %v562, %v589
        %v591 = vcombine.high %v569, %v569
        %v592 = vcombine.high %v576, %v576
        %v593 = vcombine.high %v583, %v583
        %v594 = vcombine.high %v590, %v590
        %v595 = vlaneseq
        %v596 = vshrl.u32 %v595, 7
        %v597 = vsub.s32 0, %v596
        %v598 = vrot.slane %v569, %v597
        %v599 = vlaneseq
        %v600 = vshrl.u32 %v599, 7
        %v601 = vsub.s32 0, %v600
        %v602 = vrot.slane %v583, %v601
        %v603 = vlaneseq
        %v604 = vshrl.u32 %v603, 7
        %v605 = vsub.s32 0, %v604
        %v606 = vrot.slane %v591, %v605
        %v607 = vlaneseq
        %v608 = vshrl.u32 %v607, 7
        %v609 = vsub.s32 0, %v608
        %v610 = vrot.slane %v593, %v609
        %v611 = vlaneseq
        %v612 = vshrl.u32 %v611, 7
        %v613 = vsub.s32 0, %v612
        %v614 = vrot.slane %v576, %v613
        %v615 = vlaneseq
        %v616 = vshrl.u32 %v615, 7
        %v617 = vsub.s32 0, %v616
        %v618 = vrot.slane %v590, %v617
        %v619 = vlaneseq
        %v620 = vshrl.u32 %v619, 7
        %v621 = vsub.s32 0, %v620
        %v622 = vrot.slane %v592, %v621
        %v623 = vlaneseq
        %v624 = vshrl.u32 %v623, 7
        %v625 = vsub.s32 0, %v624
        %v626 = vrot.slane %v594, %v625
        %v635 = vmul.f32 %v245, %v598
        %v636 = vmul.f32 %v246, %v598
        %v637 = vmul.f32 %v247, %v602
        %v638 = vmul.f32 %v248, %v602
        %v639 = vmul.f32 %v249, %v606
        %v640 = vmul.f32 %v250, %v606
        %v641 = vmul.f32 %v251, %v610
        %v642 = vmul.f32 %v252, %v610
        %v643 = vmul.f32 %v253, %v614
        %v644 = vmul.f32 %v254, %v614
        %v645 = vmul.f32 %v255, %v618
        %v646 = vmul.f32 %v256, %v618
        %v647 = vmul.f32 %v257, %v622
        %v648 = vmul.f32 %v258, %v622
        %v649 = vmul.f32 %v259, %v626
        %v650 = vmul.f32 %v260, %v626
        %v651 = vsel %vm376, %v635, 0.0
        %652 = vadd.xlane.f32.xlu0 %v651
        %v653 = vpop.xlane.xlu0 %652
        %v654 = vsel %vm376, %v636, 0.0
        %655 = vadd.xlane.f32.xlu0 %v654
        %v656 = vpop.xlane.xlu0 %655
        %v657 = vsel %vm376, %v637, 0.0
        %658 = vadd.xlane.f32.xlu0 %v657
        %v659 = vpop.xlane.xlu0 %658
        %v660 = vsel %vm376, %v638, 0.0
        %661 = vadd.xlane.f32.xlu0 %v660
        %v662 = vpop.xlane.xlu0 %661
        %v663 = vsel %vm376, %v639, 0.0
        %664 = vadd.xlane.f32.xlu0 %v663
        %v665 = vpop.xlane.xlu0 %664
        %v666 = vsel %vm376, %v640, 0.0
        %667 = vadd.xlane.f32.xlu0 %v666
        %v668 = vpop.xlane.xlu0 %667
        %v669 = vsel %vm376, %v641, 0.0
        %670 = vadd.xlane.f32.xlu0 %v669
        %v671 = vpop.xlane.xlu0 %670
        %v672 = vsel %vm376, %v642, 0.0
        %673 = vadd.xlane.f32.xlu0 %v672
        %v674 = vpop.xlane.xlu0 %673
        %v675 = vsel %vm376, %v643, 0.0
        %676 = vadd.xlane.f32.xlu0 %v675
        %v677 = vpop.xlane.xlu0 %676
        %v678 = vsel %vm376, %v644, 0.0
        %679 = vadd.xlane.f32.xlu0 %v678
        %v680 = vpop.xlane.xlu0 %679
        %v681 = vsel %vm376, %v645, 0.0
        %682 = vadd.xlane.f32.xlu0 %v681
        %v683 = vpop.xlane.xlu0 %682
        %v684 = vsel %vm376, %v646, 0.0
        %685 = vadd.xlane.f32.xlu0 %v684
        %v686 = vpop.xlane.xlu0 %685
        %v687 = vsel %vm376, %v647, 0.0
        %688 = vadd.xlane.f32.xlu0 %v687
        %v689 = vpop.xlane.xlu0 %688
        %v690 = vsel %vm376, %v648, 0.0
        %691 = vadd.xlane.f32.xlu0 %v690
        %v692 = vpop.xlane.xlu0 %691
        %v693 = vsel %vm376, %v649, 0.0
        %694 = vadd.xlane.f32.xlu0 %v693
        %v695 = vpop.xlane.xlu0 %694
        %v696 = vsel %vm376, %v650, 0.0
        %697 = vadd.xlane.f32.xlu0 %v696
        %v698 = vpop.xlane.xlu0 %697
        %v715 = vlaneseq
        %v716 = vshrl.u32 %v715, 7
        %v717 = vsub.s32 %v264, %v716
        %v718 = vrot.slane %v653, %v717
        %v719 = vlaneseq
        %v720 = vshrl.u32 %v719, 7
        %v721 = vsub.s32 %v445, %v720
        %v722 = vrot.slane %v656, %v721
        %v723 = vsel %vm450, %v722, %v718
        %v724 = vlaneseq
        %v725 = vshrl.u32 %v724, 7
        %v726 = vsub.s32 %v264, %v725
        %v727 = vrot.slane %v659, %v726
        %v728 = vlaneseq
        %v729 = vshrl.u32 %v728, 7
        %v730 = vsub.s32 %v445, %v729
        %v731 = vrot.slane %v662, %v730
        %v732 = vsel %vm450, %v731, %v727
        %v733 = vlaneseq
        %v734 = vshrl.u32 %v733, 7
        %v735 = vsub.s32 %v264, %v734
        %v736 = vrot.slane %v665, %v735
        %v737 = vlaneseq
        %v738 = vshrl.u32 %v737, 7
        %v739 = vsub.s32 %v445, %v738
        %v740 = vrot.slane %v668, %v739
        %v741 = vsel %vm450, %v740, %v736
        %v742 = vlaneseq
        %v743 = vshrl.u32 %v742, 7
        %v744 = vsub.s32 %v264, %v743
        %v745 = vrot.slane %v671, %v744
        %v746 = vlaneseq
        %v747 = vshrl.u32 %v746, 7
        %v748 = vsub.s32 %v445, %v747
        %v749 = vrot.slane %v674, %v748
        %v750 = vsel %vm450, %v749, %v745
        %v751 = vlaneseq
        %v752 = vshrl.u32 %v751, 7
        %v753 = vsub.s32 %v264, %v752
        %v754 = vrot.slane %v677, %v753
        %v755 = vlaneseq
        %v756 = vshrl.u32 %v755, 7
        %v757 = vsub.s32 %v445, %v756
        %v758 = vrot.slane %v680, %v757
        %v759 = vsel %vm450, %v758, %v754
        %v760 = vlaneseq
        %v761 = vshrl.u32 %v760, 7
        %v762 = vsub.s32 %v264, %v761
        %v763 = vrot.slane %v683, %v762
        %v764 = vlaneseq
        %v765 = vshrl.u32 %v764, 7
        %v766 = vsub.s32 %v445, %v765
        %v767 = vrot.slane %v686, %v766
        %v768 = vsel %vm450, %v767, %v763
        %v769 = vlaneseq
        %v770 = vshrl.u32 %v769, 7
        %v771 = vsub.s32 %v264, %v770
        %v772 = vrot.slane %v689, %v771
        %v773 = vlaneseq
        %v774 = vshrl.u32 %v773, 7
        %v775 = vsub.s32 %v445, %v774
        %v776 = vrot.slane %v692, %v775
        %v777 = vsel %vm450, %v776, %v772
        %v778 = vlaneseq
        %v779 = vshrl.u32 %v778, 7
        %v780 = vsub.s32 %v264, %v779
        %v781 = vrot.slane %v695, %v780
        %v782 = vlaneseq
        %v783 = vshrl.u32 %v782, 7
        %v784 = vsub.s32 %v445, %v783
        %v785 = vrot.slane %v698, %v784
        %v786 = vsel %vm450, %v785, %v781
        %v787 = vsel %vm515, %v732, %v723
        %v788 = vsel %vm517, %v741, %v787
        %v789 = vsel %vm519, %v750, %v788
        %v790 = vsel %vm521, %v759, %v789
        %v791 = vsel %vm523, %v768, %v790
        %v792 = vsel %vm525, %v777, %v791
        %v793 = vsel %vm527, %v786, %v792
        %v795 = vsub.f32 %v261, %v793
        %v796 = vand.u32 2147483647, %v795
        %v797 = vsel %vm376, %v796, 0.0
        %798 = vadd.xlane.f32.xlu0 %v797
        %v799 = vpop.xlane.xlu0 %798
        %v800 = vrot.slane %v799, 4
        %v801 = vadd.f32 %v799, %v800
        %v802 = vrot.slane %v801, 2
        %v803 = vadd.f32 %v801, %v802
        %v804 = vrot.slane %v803, 1
        %v805 = vadd.f32 %v803, %v804
        %s806 = vtos %v805
        %v807 = vmul.f32 %v795, %v262
        %v808 = vadd.f32 %v544, %v807
        %v809 = vsel %vm268, %v808, 0.0
        %v811 = vcombine.high %v809, %v809
        %v813 = vunpack.c.l.s4 1966171168
        %v814 = vunpack.c.0.s8 %v813
        %v815 = vlaneseq
        %v816 = vshrl.u32 %v815, 7
        %v817 = vsub.s32 %v814, %v816
        %v818 = vrot.slane %v809, %v817
        %v820 = vunpack.c.l.s4 1966171168
        %v821 = vunpack.c.0.s8 %v820
        %v822 = vlaneseq
        %v823 = vshrl.u32 %v822, 7
        %v824 = vsub.s32 %v821, %v823
        %v825 = vrot.slane %v811, %v824
        %v826 = vcombine.high %v818, %v818
        %v827 = vcombine.high %v825, %v825
        %v829 = vunpack.c.l.s4 1966171168
        %v830 = vunpack.c.0.s8 %v829
        %v831 = vlaneseq
        %v832 = vshrl.u32 %v831, 7
        %v833 = vsub.s32 %v830, %v832
        %v834 = vrot.slane %v818, %v833
        %v836 = vunpack.c.l.s4 1966171168
        %v837 = vunpack.c.0.s8 %v836
        %v838 = vlaneseq
        %v839 = vshrl.u32 %v838, 7
        %v840 = vsub.s32 %v837, %v839
        %v841 = vrot.slane %v825, %v840
        %v843 = vunpack.c.l.s4 1966171168
        %v844 = vunpack.c.0.s8 %v843
        %v845 = vlaneseq
        %v846 = vshrl.u32 %v845, 7
        %v847 = vsub.s32 %v844, %v846
        %v848 = vrot.slane %v826, %v847
        %v850 = vunpack.c.l.s4 1966171168
        %v851 = vunpack.c.0.s8 %v850
        %v852 = vlaneseq
        %v853 = vshrl.u32 %v852, 7
        %v854 = vsub.s32 %v851, %v853
        %v855 = vrot.slane %v827, %v854
        %v856 = vcombine.high %v834, %v834
        %v857 = vcombine.high %v841, %v841
        %v858 = vcombine.high %v848, %v848
        %v859 = vcombine.high %v855, %v855
        %v860 = vlaneseq
        %v861 = vshrl.u32 %v860, 7
        %v862 = vsub.s32 0, %v861
        %v863 = vrot.slane %v834, %v862
        %v864 = vlaneseq
        %v865 = vshrl.u32 %v864, 7
        %v866 = vsub.s32 0, %v865
        %v867 = vrot.slane %v848, %v866
        %v868 = vlaneseq
        %v869 = vshrl.u32 %v868, 7
        %v870 = vsub.s32 0, %v869
        %v871 = vrot.slane %v856, %v870
        %v872 = vlaneseq
        %v873 = vshrl.u32 %v872, 7
        %v874 = vsub.s32 0, %v873
        %v875 = vrot.slane %v858, %v874
        %v876 = vlaneseq
        %v877 = vshrl.u32 %v876, 7
        %v878 = vsub.s32 0, %v877
        %v879 = vrot.slane %v841, %v878
        %v880 = vlaneseq
        %v881 = vshrl.u32 %v880, 7
        %v882 = vsub.s32 0, %v881
        %v883 = vrot.slane %v855, %v882
        %v884 = vlaneseq
        %v885 = vshrl.u32 %v884, 7
        %v886 = vsub.s32 0, %v885
        %v887 = vrot.slane %v857, %v886
        %v888 = vlaneseq
        %v889 = vshrl.u32 %v888, 7
        %v890 = vsub.s32 0, %v889
        %v891 = vrot.slane %v859, %v890
        %v900 = vmul.f32 %v245, %v863
        %v901 = vmul.f32 %v246, %v863
        %v902 = vmul.f32 %v247, %v867
        %v903 = vmul.f32 %v248, %v867
        %v904 = vmul.f32 %v249, %v871
        %v905 = vmul.f32 %v250, %v871
        %v906 = vmul.f32 %v251, %v875
        %v907 = vmul.f32 %v252, %v875
        %v908 = vmul.f32 %v253, %v879
        %v909 = vmul.f32 %v254, %v879
        %v910 = vmul.f32 %v255, %v883
        %v911 = vmul.f32 %v256, %v883
        %v912 = vmul.f32 %v257, %v887
        %v913 = vmul.f32 %v258, %v887
        %v914 = vmul.f32 %v259, %v891
        %v915 = vmul.f32 %v260, %v891
        %v916 = vsel %vm376, %v900, 0.0
        %917 = vadd.xlane.f32.xlu0 %v916
        %v918 = vpop.xlane.xlu0 %917
        %v919 = vsel %vm376, %v901, 0.0
        %920 = vadd.xlane.f32.xlu0 %v919
        %v921 = vpop.xlane.xlu0 %920
        %v922 = vsel %vm376, %v902, 0.0
        %923 = vadd.xlane.f32.xlu0 %v922
        %v924 = vpop.xlane.xlu0 %923
        %v925 = vsel %vm376, %v903, 0.0
        %926 = vadd.xlane.f32.xlu0 %v925
        %v927 = vpop.xlane.xlu0 %926
        %v928 = vsel %vm376, %v904, 0.0
        %929 = vadd.xlane.f32.xlu0 %v928
        %v930 = vpop.xlane.xlu0 %929
        %v931 = vsel %vm376, %v905, 0.0
        %932 = vadd.xlane.f32.xlu0 %v931
        %v933 = vpop.xlane.xlu0 %932
        %v934 = vsel %vm376, %v906, 0.0
        %935 = vadd.xlane.f32.xlu0 %v934
        %v936 = vpop.xlane.xlu0 %935
        %v937 = vsel %vm376, %v907, 0.0
        %938 = vadd.xlane.f32.xlu0 %v937
        %v939 = vpop.xlane.xlu0 %938
        %v940 = vsel %vm376, %v908, 0.0
        %941 = vadd.xlane.f32.xlu0 %v940
        %v942 = vpop.xlane.xlu0 %941
        %v943 = vsel %vm376, %v909, 0.0
        %944 = vadd.xlane.f32.xlu0 %v943
        %v945 = vpop.xlane.xlu0 %944
        %v946 = vsel %vm376, %v910, 0.0
        %947 = vadd.xlane.f32.xlu0 %v946
        %v948 = vpop.xlane.xlu0 %947
        %v949 = vsel %vm376, %v911, 0.0
        %950 = vadd.xlane.f32.xlu0 %v949
        %v951 = vpop.xlane.xlu0 %950
        %v952 = vsel %vm376, %v912, 0.0
        %953 = vadd.xlane.f32.xlu0 %v952
        %v954 = vpop.xlane.xlu0 %953
        %v955 = vsel %vm376, %v913, 0.0
        %956 = vadd.xlane.f32.xlu0 %v955
        %v957 = vpop.xlane.xlu0 %956
        %v958 = vsel %vm376, %v914, 0.0
        %959 = vadd.xlane.f32.xlu0 %v958
        %v960 = vpop.xlane.xlu0 %959
        %v961 = vsel %vm376, %v915, 0.0
        %962 = vadd.xlane.f32.xlu0 %v961
        %v963 = vpop.xlane.xlu0 %962
        %v980 = vlaneseq
        %v981 = vshrl.u32 %v980, 7
        %v982 = vsub.s32 %v264, %v981
        %v983 = vrot.slane %v918, %v982
        %v984 = vlaneseq
        %v985 = vshrl.u32 %v984, 7
        %v986 = vsub.s32 %v445, %v985
        %v987 = vrot.slane %v921, %v986
        %v988 = vsel %vm450, %v987, %v983
        %v989 = vlaneseq
        %v990 = vshrl.u32 %v989, 7
        %v991 = vsub.s32 %v264, %v990
        %v992 = vrot.slane %v924, %v991
        %v993 = vlaneseq
        %v994 = vshrl.u32 %v993, 7
        %v995 = vsub.s32 %v445, %v994
        %v996 = vrot.slane %v927, %v995
        %v997 = vsel %vm450, %v996, %v992
        %v998 = vlaneseq
        %v999 = vshrl.u32 %v998, 7
        %v1000 = vsub.s32 %v264, %v999
        %v1001 = vrot.slane %v930, %v1000
        %v1002 = vlaneseq
        %v1003 = vshrl.u32 %v1002, 7
        %v1004 = vsub.s32 %v445, %v1003
        %v1005 = vrot.slane %v933, %v1004
        %v1006 = vsel %vm450, %v1005, %v1001
        %v1007 = vlaneseq
        %v1008 = vshrl.u32 %v1007, 7
        %v1009 = vsub.s32 %v264, %v1008
        %v1010 = vrot.slane %v936, %v1009
        %v1011 = vlaneseq
        %v1012 = vshrl.u32 %v1011, 7
        %v1013 = vsub.s32 %v445, %v1012
        %v1014 = vrot.slane %v939, %v1013
        %v1015 = vsel %vm450, %v1014, %v1010
        %v1016 = vlaneseq
        %v1017 = vshrl.u32 %v1016, 7
        %v1018 = vsub.s32 %v264, %v1017
        %v1019 = vrot.slane %v942, %v1018
        %v1020 = vlaneseq
        %v1021 = vshrl.u32 %v1020, 7
        %v1022 = vsub.s32 %v445, %v1021
        %v1023 = vrot.slane %v945, %v1022
        %v1024 = vsel %vm450, %v1023, %v1019
        %v1025 = vlaneseq
        %v1026 = vshrl.u32 %v1025, 7
        %v1027 = vsub.s32 %v264, %v1026
        %v1028 = vrot.slane %v948, %v1027
        %v1029 = vlaneseq
        %v1030 = vshrl.u32 %v1029, 7
        %v1031 = vsub.s32 %v445, %v1030
        %v1032 = vrot.slane %v951, %v1031
        %v1033 = vsel %vm450, %v1032, %v1028
        %v1034 = vlaneseq
        %v1035 = vshrl.u32 %v1034, 7
        %v1036 = vsub.s32 %v264, %v1035
        %v1037 = vrot.slane %v954, %v1036
        %v1038 = vlaneseq
        %v1039 = vshrl.u32 %v1038, 7
        %v1040 = vsub.s32 %v445, %v1039
        %v1041 = vrot.slane %v957, %v1040
        %v1042 = vsel %vm450, %v1041, %v1037
        %v1043 = vlaneseq
        %v1044 = vshrl.u32 %v1043, 7
        %v1045 = vsub.s32 %v264, %v1044
        %v1046 = vrot.slane %v960, %v1045
        %v1047 = vlaneseq
        %v1048 = vshrl.u32 %v1047, 7
        %v1049 = vsub.s32 %v445, %v1048
        %v1050 = vrot.slane %v963, %v1049
        %v1051 = vsel %vm450, %v1050, %v1046
        %v1052 = vsel %vm515, %v997, %v988
        %v1053 = vsel %vm517, %v1006, %v1052
        %v1054 = vsel %vm519, %v1015, %v1053
        %v1055 = vsel %vm521, %v1024, %v1054
        %v1056 = vsel %vm523, %v1033, %v1055
        %v1057 = vsel %vm525, %v1042, %v1056
        %v1058 = vsel %vm527, %v1051, %v1057
        %v1060 = vsub.f32 %v261, %v1058
        %v1061 = vand.u32 2147483647, %v1060
        %v1062 = vsel %vm376, %v1061, 0.0
        %1063 = vadd.xlane.f32.xlu0 %v1062
        %v1064 = vpop.xlane.xlu0 %1063
        %v1065 = vrot.slane %v1064, 4
        %v1066 = vadd.f32 %v1064, %v1065
        %v1067 = vrot.slane %v1066, 2
        %v1068 = vadd.f32 %v1066, %v1067
        %v1069 = vrot.slane %v1068, 1
        %v1070 = vadd.f32 %v1068, %v1069
        %s1071 = vtos %v1070
        %v1072 = vmul.f32 %v1060, %v262
        %v1073 = vadd.f32 %v809, %v1072
        %v1074 = vsel %vm268, %v1073, 0.0
        %v1076 = vcombine.high %v1074, %v1074
        %v1078 = vunpack.c.l.s4 1966171168
        %v1079 = vunpack.c.0.s8 %v1078
        %v1080 = vlaneseq
        %v1081 = vshrl.u32 %v1080, 7
        %v1082 = vsub.s32 %v1079, %v1081
        %v1083 = vrot.slane %v1074, %v1082
        %v1085 = vunpack.c.l.s4 1966171168
        %v1086 = vunpack.c.0.s8 %v1085
        %v1087 = vlaneseq
        %v1088 = vshrl.u32 %v1087, 7
        %v1089 = vsub.s32 %v1086, %v1088
        %v1090 = vrot.slane %v1076, %v1089
        %v1091 = vcombine.high %v1083, %v1083
        %v1092 = vcombine.high %v1090, %v1090
        %v1094 = vunpack.c.l.s4 1966171168
        %v1095 = vunpack.c.0.s8 %v1094
        %v1096 = vlaneseq
        %v1097 = vshrl.u32 %v1096, 7
        %v1098 = vsub.s32 %v1095, %v1097
        %v1099 = vrot.slane %v1083, %v1098
        %v1101 = vunpack.c.l.s4 1966171168
        %v1102 = vunpack.c.0.s8 %v1101
        %v1103 = vlaneseq
        %v1104 = vshrl.u32 %v1103, 7
        %v1105 = vsub.s32 %v1102, %v1104
        %v1106 = vrot.slane %v1090, %v1105
        %v1108 = vunpack.c.l.s4 1966171168
        %v1109 = vunpack.c.0.s8 %v1108
        %v1110 = vlaneseq
        %v1111 = vshrl.u32 %v1110, 7
        %v1112 = vsub.s32 %v1109, %v1111
        %v1113 = vrot.slane %v1091, %v1112
        %v1115 = vunpack.c.l.s4 1966171168
        %v1116 = vunpack.c.0.s8 %v1115
        %v1117 = vlaneseq
        %v1118 = vshrl.u32 %v1117, 7
        %v1119 = vsub.s32 %v1116, %v1118
        %v1120 = vrot.slane %v1092, %v1119
        %v1121 = vcombine.high %v1099, %v1099
        %v1122 = vcombine.high %v1106, %v1106
        %v1123 = vcombine.high %v1113, %v1113
        %v1124 = vcombine.high %v1120, %v1120
        %v1125 = vlaneseq
        %v1126 = vshrl.u32 %v1125, 7
        %v1127 = vsub.s32 0, %v1126
        %v1128 = vrot.slane %v1099, %v1127
        %v1129 = vlaneseq
        %v1130 = vshrl.u32 %v1129, 7
        %v1131 = vsub.s32 0, %v1130
        %v1132 = vrot.slane %v1113, %v1131
        %v1133 = vlaneseq
        %v1134 = vshrl.u32 %v1133, 7
        %v1135 = vsub.s32 0, %v1134
        %v1136 = vrot.slane %v1121, %v1135
        %v1137 = vlaneseq
        %v1138 = vshrl.u32 %v1137, 7
        %v1139 = vsub.s32 0, %v1138
        %v1140 = vrot.slane %v1123, %v1139
        %v1141 = vlaneseq
        %v1142 = vshrl.u32 %v1141, 7
        %v1143 = vsub.s32 0, %v1142
        %v1144 = vrot.slane %v1106, %v1143
        %v1145 = vlaneseq
        %v1146 = vshrl.u32 %v1145, 7
        %v1147 = vsub.s32 0, %v1146
        %v1148 = vrot.slane %v1120, %v1147
        %v1149 = vlaneseq
        %v1150 = vshrl.u32 %v1149, 7
        %v1151 = vsub.s32 0, %v1150
        %v1152 = vrot.slane %v1122, %v1151
        %v1153 = vlaneseq
        %v1154 = vshrl.u32 %v1153, 7
        %v1155 = vsub.s32 0, %v1154
        %v1156 = vrot.slane %v1124, %v1155
        %v1165 = vmul.f32 %v245, %v1128
        %v1166 = vmul.f32 %v246, %v1128
        %v1167 = vmul.f32 %v247, %v1132
        %v1168 = vmul.f32 %v248, %v1132
        %v1169 = vmul.f32 %v249, %v1136
        %v1170 = vmul.f32 %v250, %v1136
        %v1171 = vmul.f32 %v251, %v1140
        %v1172 = vmul.f32 %v252, %v1140
        %v1173 = vmul.f32 %v253, %v1144
        %v1174 = vmul.f32 %v254, %v1144
        %v1175 = vmul.f32 %v255, %v1148
        %v1176 = vmul.f32 %v256, %v1148
        %v1177 = vmul.f32 %v257, %v1152
        %v1178 = vmul.f32 %v258, %v1152
        %v1179 = vmul.f32 %v259, %v1156
        %v1180 = vmul.f32 %v260, %v1156
        %v1181 = vsel %vm376, %v1165, 0.0
        %1182 = vadd.xlane.f32.xlu0 %v1181
        %v1183 = vpop.xlane.xlu0 %1182
        %v1184 = vsel %vm376, %v1166, 0.0
        %1185 = vadd.xlane.f32.xlu0 %v1184
        %v1186 = vpop.xlane.xlu0 %1185
        %v1187 = vsel %vm376, %v1167, 0.0
        %1188 = vadd.xlane.f32.xlu0 %v1187
        %v1189 = vpop.xlane.xlu0 %1188
        %v1190 = vsel %vm376, %v1168, 0.0
        %1191 = vadd.xlane.f32.xlu0 %v1190
        %v1192 = vpop.xlane.xlu0 %1191
        %v1193 = vsel %vm376, %v1169, 0.0
        %1194 = vadd.xlane.f32.xlu0 %v1193
        %v1195 = vpop.xlane.xlu0 %1194
        %v1196 = vsel %vm376, %v1170, 0.0
        %1197 = vadd.xlane.f32.xlu0 %v1196
        %v1198 = vpop.xlane.xlu0 %1197
        %v1199 = vsel %vm376, %v1171, 0.0
        %1200 = vadd.xlane.f32.xlu0 %v1199
        %v1201 = vpop.xlane.xlu0 %1200
        %v1202 = vsel %vm376, %v1172, 0.0
        %1203 = vadd.xlane.f32.xlu0 %v1202
        %v1204 = vpop.xlane.xlu0 %1203
        %v1205 = vsel %vm376, %v1173, 0.0
        %1206 = vadd.xlane.f32.xlu0 %v1205
        %v1207 = vpop.xlane.xlu0 %1206
        %v1208 = vsel %vm376, %v1174, 0.0
        %1209 = vadd.xlane.f32.xlu0 %v1208
        %v1210 = vpop.xlane.xlu0 %1209
        %v1211 = vsel %vm376, %v1175, 0.0
        %1212 = vadd.xlane.f32.xlu0 %v1211
        %v1213 = vpop.xlane.xlu0 %1212
        %v1214 = vsel %vm376, %v1176, 0.0
        %1215 = vadd.xlane.f32.xlu0 %v1214
        %v1216 = vpop.xlane.xlu0 %1215
        %v1217 = vsel %vm376, %v1177, 0.0
        %1218 = vadd.xlane.f32.xlu0 %v1217
        %v1219 = vpop.xlane.xlu0 %1218
        %v1220 = vsel %vm376, %v1178, 0.0
        %1221 = vadd.xlane.f32.xlu0 %v1220
        %v1222 = vpop.xlane.xlu0 %1221
        %v1223 = vsel %vm376, %v1179, 0.0
        %1224 = vadd.xlane.f32.xlu0 %v1223
        %v1225 = vpop.xlane.xlu0 %1224
        %v1226 = vsel %vm376, %v1180, 0.0
        %1227 = vadd.xlane.f32.xlu0 %v1226
        %v1228 = vpop.xlane.xlu0 %1227
        %v1245 = vlaneseq
        %v1246 = vshrl.u32 %v1245, 7
        %v1247 = vsub.s32 %v264, %v1246
        %v1248 = vrot.slane %v1183, %v1247
        %v1249 = vlaneseq
        %v1250 = vshrl.u32 %v1249, 7
        %v1251 = vsub.s32 %v445, %v1250
        %v1252 = vrot.slane %v1186, %v1251
        %v1253 = vsel %vm450, %v1252, %v1248
        %v1254 = vlaneseq
        %v1255 = vshrl.u32 %v1254, 7
        %v1256 = vsub.s32 %v264, %v1255
        %v1257 = vrot.slane %v1189, %v1256
        %v1258 = vlaneseq
        %v1259 = vshrl.u32 %v1258, 7
        %v1260 = vsub.s32 %v445, %v1259
        %v1261 = vrot.slane %v1192, %v1260
        %v1262 = vsel %vm450, %v1261, %v1257
        %v1263 = vlaneseq
        %v1264 = vshrl.u32 %v1263, 7
        %v1265 = vsub.s32 %v264, %v1264
        %v1266 = vrot.slane %v1195, %v1265
        %v1267 = vlaneseq
        %v1268 = vshrl.u32 %v1267, 7
        %v1269 = vsub.s32 %v445, %v1268
        %v1270 = vrot.slane %v1198, %v1269
        %v1271 = vsel %vm450, %v1270, %v1266
        %v1272 = vlaneseq
        %v1273 = vshrl.u32 %v1272, 7
        %v1274 = vsub.s32 %v264, %v1273
        %v1275 = vrot.slane %v1201, %v1274
        %v1276 = vlaneseq
        %v1277 = vshrl.u32 %v1276, 7
        %v1278 = vsub.s32 %v445, %v1277
        %v1279 = vrot.slane %v1204, %v1278
        %v1280 = vsel %vm450, %v1279, %v1275
        %v1281 = vlaneseq
        %v1282 = vshrl.u32 %v1281, 7
        %v1283 = vsub.s32 %v264, %v1282
        %v1284 = vrot.slane %v1207, %v1283
        %v1285 = vlaneseq
        %v1286 = vshrl.u32 %v1285, 7
        %v1287 = vsub.s32 %v445, %v1286
        %v1288 = vrot.slane %v1210, %v1287
        %v1289 = vsel %vm450, %v1288, %v1284
        %v1290 = vlaneseq
        %v1291 = vshrl.u32 %v1290, 7
        %v1292 = vsub.s32 %v264, %v1291
        %v1293 = vrot.slane %v1213, %v1292
        %v1294 = vlaneseq
        %v1295 = vshrl.u32 %v1294, 7
        %v1296 = vsub.s32 %v445, %v1295
        %v1297 = vrot.slane %v1216, %v1296
        %v1298 = vsel %vm450, %v1297, %v1293
        %v1299 = vlaneseq
        %v1300 = vshrl.u32 %v1299, 7
        %v1301 = vsub.s32 %v264, %v1300
        %v1302 = vrot.slane %v1219, %v1301
        %v1303 = vlaneseq
        %v1304 = vshrl.u32 %v1303, 7
        %v1305 = vsub.s32 %v445, %v1304
        %v1306 = vrot.slane %v1222, %v1305
        %v1307 = vsel %vm450, %v1306, %v1302
        %v1308 = vlaneseq
        %v1309 = vshrl.u32 %v1308, 7
        %v1310 = vsub.s32 %v264, %v1309
        %v1311 = vrot.slane %v1225, %v1310
        %v1312 = vlaneseq
        %v1313 = vshrl.u32 %v1312, 7
        %v1314 = vsub.s32 %v445, %v1313
        %v1315 = vrot.slane %v1228, %v1314
        %v1316 = vsel %vm450, %v1315, %v1311
        %v1317 = vsel %vm515, %v1262, %v1253
        %v1318 = vsel %vm517, %v1271, %v1317
        %v1319 = vsel %vm519, %v1280, %v1318
        %v1320 = vsel %vm521, %v1289, %v1319
        %v1321 = vsel %vm523, %v1298, %v1320
        %v1322 = vsel %vm525, %v1307, %v1321
        %v1323 = vsel %vm527, %v1316, %v1322
        %v1325 = vsub.f32 %v261, %v1323
        %v1326 = vand.u32 2147483647, %v1325
        %v1327 = vsel %vm376, %v1326, 0.0
        %1328 = vadd.xlane.f32.xlu0 %v1327
        %v1329 = vpop.xlane.xlu0 %1328
        %v1330 = vrot.slane %v1329, 4
        %v1331 = vadd.f32 %v1329, %v1330
        %v1332 = vrot.slane %v1331, 2
        %v1333 = vadd.f32 %v1331, %v1332
        %v1334 = vrot.slane %v1333, 1
        %v1335 = vadd.f32 %v1333, %v1334
        %s1336 = vtos %v1335
        %v1337 = vmul.f32 %v1325, %v262
        %v1338 = vadd.f32 %v1074, %v1337
        %v1339 = vsel %vm268, %v1338, 0.0
        %v1341 = vcombine.high %v1339, %v1339
        %v1343 = vunpack.c.l.s4 1966171168
        %v1344 = vunpack.c.0.s8 %v1343
        %v1345 = vlaneseq
        %v1346 = vshrl.u32 %v1345, 7
        %v1347 = vsub.s32 %v1344, %v1346
        %v1348 = vrot.slane %v1339, %v1347
        %v1350 = vunpack.c.l.s4 1966171168
        %v1351 = vunpack.c.0.s8 %v1350
        %v1352 = vlaneseq
        %v1353 = vshrl.u32 %v1352, 7
        %v1354 = vsub.s32 %v1351, %v1353
        %v1355 = vrot.slane %v1341, %v1354
        %v1356 = vcombine.high %v1348, %v1348
        %v1357 = vcombine.high %v1355, %v1355
        %v1359 = vunpack.c.l.s4 1966171168
        %v1360 = vunpack.c.0.s8 %v1359
        %v1361 = vlaneseq
        %v1362 = vshrl.u32 %v1361, 7
        %v1363 = vsub.s32 %v1360, %v1362
        %v1364 = vrot.slane %v1348, %v1363
        %v1366 = vunpack.c.l.s4 1966171168
        %v1367 = vunpack.c.0.s8 %v1366
        %v1368 = vlaneseq
        %v1369 = vshrl.u32 %v1368, 7
        %v1370 = vsub.s32 %v1367, %v1369
        %v1371 = vrot.slane %v1355, %v1370
        %v1373 = vunpack.c.l.s4 1966171168
        %v1374 = vunpack.c.0.s8 %v1373
        %v1375 = vlaneseq
        %v1376 = vshrl.u32 %v1375, 7
        %v1377 = vsub.s32 %v1374, %v1376
        %v1378 = vrot.slane %v1356, %v1377
        %v1380 = vunpack.c.l.s4 1966171168
        %v1381 = vunpack.c.0.s8 %v1380
        %v1382 = vlaneseq
        %v1383 = vshrl.u32 %v1382, 7
        %v1384 = vsub.s32 %v1381, %v1383
        %v1385 = vrot.slane %v1357, %v1384
        %v1386 = vcombine.high %v1364, %v1364
        %v1387 = vcombine.high %v1371, %v1371
        %v1388 = vcombine.high %v1378, %v1378
        %v1389 = vcombine.high %v1385, %v1385
        %v1390 = vlaneseq
        %v1391 = vshrl.u32 %v1390, 7
        %v1392 = vsub.s32 0, %v1391
        %v1393 = vrot.slane %v1364, %v1392
        %v1394 = vlaneseq
        %v1395 = vshrl.u32 %v1394, 7
        %v1396 = vsub.s32 0, %v1395
        %v1397 = vrot.slane %v1378, %v1396
        %v1398 = vlaneseq
        %v1399 = vshrl.u32 %v1398, 7
        %v1400 = vsub.s32 0, %v1399
        %v1401 = vrot.slane %v1386, %v1400
        %v1402 = vlaneseq
        %v1403 = vshrl.u32 %v1402, 7
        %v1404 = vsub.s32 0, %v1403
        %v1405 = vrot.slane %v1388, %v1404
        %v1406 = vlaneseq
        %v1407 = vshrl.u32 %v1406, 7
        %v1408 = vsub.s32 0, %v1407
        %v1409 = vrot.slane %v1371, %v1408
        %v1410 = vlaneseq
        %v1411 = vshrl.u32 %v1410, 7
        %v1412 = vsub.s32 0, %v1411
        %v1413 = vrot.slane %v1385, %v1412
        %v1414 = vlaneseq
        %v1415 = vshrl.u32 %v1414, 7
        %v1416 = vsub.s32 0, %v1415
        %v1417 = vrot.slane %v1387, %v1416
        %v1418 = vlaneseq
        %v1419 = vshrl.u32 %v1418, 7
        %v1420 = vsub.s32 0, %v1419
        %v1421 = vrot.slane %v1389, %v1420
        %v1430 = vmul.f32 %v245, %v1393
        %v1431 = vmul.f32 %v246, %v1393
        %v1432 = vmul.f32 %v247, %v1397
        %v1433 = vmul.f32 %v248, %v1397
        %v1434 = vmul.f32 %v249, %v1401
        %v1435 = vmul.f32 %v250, %v1401
        %v1436 = vmul.f32 %v251, %v1405
        %v1437 = vmul.f32 %v252, %v1405
        %v1438 = vmul.f32 %v253, %v1409
        %v1439 = vmul.f32 %v254, %v1409
        %v1440 = vmul.f32 %v255, %v1413
        %v1441 = vmul.f32 %v256, %v1413
        %v1442 = vmul.f32 %v257, %v1417
        %v1443 = vmul.f32 %v258, %v1417
        %v1444 = vmul.f32 %v259, %v1421
        %v1445 = vmul.f32 %v260, %v1421
        %v1446 = vsel %vm376, %v1430, 0.0
        %1447 = vadd.xlane.f32.xlu0 %v1446
        %v1448 = vpop.xlane.xlu0 %1447
        %v1449 = vsel %vm376, %v1431, 0.0
        %1450 = vadd.xlane.f32.xlu0 %v1449
        %v1451 = vpop.xlane.xlu0 %1450
        %v1452 = vsel %vm376, %v1432, 0.0
        %1453 = vadd.xlane.f32.xlu0 %v1452
        %v1454 = vpop.xlane.xlu0 %1453
        %v1455 = vsel %vm376, %v1433, 0.0
        %1456 = vadd.xlane.f32.xlu0 %v1455
        %v1457 = vpop.xlane.xlu0 %1456
        %v1458 = vsel %vm376, %v1434, 0.0
        %1459 = vadd.xlane.f32.xlu0 %v1458
        %v1460 = vpop.xlane.xlu0 %1459
        %v1461 = vsel %vm376, %v1435, 0.0
        %1462 = vadd.xlane.f32.xlu0 %v1461
        %v1463 = vpop.xlane.xlu0 %1462
        %v1464 = vsel %vm376, %v1436, 0.0
        %1465 = vadd.xlane.f32.xlu0 %v1464
        %v1466 = vpop.xlane.xlu0 %1465
        %v1467 = vsel %vm376, %v1437, 0.0
        %1468 = vadd.xlane.f32.xlu0 %v1467
        %v1469 = vpop.xlane.xlu0 %1468
        %v1470 = vsel %vm376, %v1438, 0.0
        %1471 = vadd.xlane.f32.xlu0 %v1470
        %v1472 = vpop.xlane.xlu0 %1471
        %v1473 = vsel %vm376, %v1439, 0.0
        %1474 = vadd.xlane.f32.xlu0 %v1473
        %v1475 = vpop.xlane.xlu0 %1474
        %v1476 = vsel %vm376, %v1440, 0.0
        %1477 = vadd.xlane.f32.xlu0 %v1476
        %v1478 = vpop.xlane.xlu0 %1477
        %v1479 = vsel %vm376, %v1441, 0.0
        %1480 = vadd.xlane.f32.xlu0 %v1479
        %v1481 = vpop.xlane.xlu0 %1480
        %v1482 = vsel %vm376, %v1442, 0.0
        %1483 = vadd.xlane.f32.xlu0 %v1482
        %v1484 = vpop.xlane.xlu0 %1483
        %v1485 = vsel %vm376, %v1443, 0.0
        %1486 = vadd.xlane.f32.xlu0 %v1485
        %v1487 = vpop.xlane.xlu0 %1486
        %v1488 = vsel %vm376, %v1444, 0.0
        %1489 = vadd.xlane.f32.xlu0 %v1488
        %v1490 = vpop.xlane.xlu0 %1489
        %v1491 = vsel %vm376, %v1445, 0.0
        %1492 = vadd.xlane.f32.xlu0 %v1491
        %v1493 = vpop.xlane.xlu0 %1492
        %v1510 = vlaneseq
        %v1511 = vshrl.u32 %v1510, 7
        %v1512 = vsub.s32 %v264, %v1511
        %v1513 = vrot.slane %v1448, %v1512
        %v1514 = vlaneseq
        %v1515 = vshrl.u32 %v1514, 7
        %v1516 = vsub.s32 %v445, %v1515
        %v1517 = vrot.slane %v1451, %v1516
        %v1518 = vsel %vm450, %v1517, %v1513
        %v1519 = vlaneseq
        %v1520 = vshrl.u32 %v1519, 7
        %v1521 = vsub.s32 %v264, %v1520
        %v1522 = vrot.slane %v1454, %v1521
        %v1523 = vlaneseq
        %v1524 = vshrl.u32 %v1523, 7
        %v1525 = vsub.s32 %v445, %v1524
        %v1526 = vrot.slane %v1457, %v1525
        %v1527 = vsel %vm450, %v1526, %v1522
        %v1528 = vlaneseq
        %v1529 = vshrl.u32 %v1528, 7
        %v1530 = vsub.s32 %v264, %v1529
        %v1531 = vrot.slane %v1460, %v1530
        %v1532 = vlaneseq
        %v1533 = vshrl.u32 %v1532, 7
        %v1534 = vsub.s32 %v445, %v1533
        %v1535 = vrot.slane %v1463, %v1534
        %v1536 = vsel %vm450, %v1535, %v1531
        %v1537 = vlaneseq
        %v1538 = vshrl.u32 %v1537, 7
        %v1539 = vsub.s32 %v264, %v1538
        %v1540 = vrot.slane %v1466, %v1539
        %v1541 = vlaneseq
        %v1542 = vshrl.u32 %v1541, 7
        %v1543 = vsub.s32 %v445, %v1542
        %v1544 = vrot.slane %v1469, %v1543
        %v1545 = vsel %vm450, %v1544, %v1540
        %v1546 = vlaneseq
        %v1547 = vshrl.u32 %v1546, 7
        %v1548 = vsub.s32 %v264, %v1547
        %v1549 = vrot.slane %v1472, %v1548
        %v1550 = vlaneseq
        %v1551 = vshrl.u32 %v1550, 7
        %v1552 = vsub.s32 %v445, %v1551
        %v1553 = vrot.slane %v1475, %v1552
        %v1554 = vsel %vm450, %v1553, %v1549
        %v1555 = vlaneseq
        %v1556 = vshrl.u32 %v1555, 7
        %v1557 = vsub.s32 %v264, %v1556
        %v1558 = vrot.slane %v1478, %v1557
        %v1559 = vlaneseq
        %v1560 = vshrl.u32 %v1559, 7
        %v1561 = vsub.s32 %v445, %v1560
        %v1562 = vrot.slane %v1481, %v1561
        %v1563 = vsel %vm450, %v1562, %v1558
        %v1564 = vlaneseq
        %v1565 = vshrl.u32 %v1564, 7
        %v1566 = vsub.s32 %v264, %v1565
        %v1567 = vrot.slane %v1484, %v1566
        %v1568 = vlaneseq
        %v1569 = vshrl.u32 %v1568, 7
        %v1570 = vsub.s32 %v445, %v1569
        %v1571 = vrot.slane %v1487, %v1570
        %v1572 = vsel %vm450, %v1571, %v1567
        %v1573 = vlaneseq
        %v1574 = vshrl.u32 %v1573, 7
        %v1575 = vsub.s32 %v264, %v1574
        %v1576 = vrot.slane %v1490, %v1575
        %v1577 = vlaneseq
        %v1578 = vshrl.u32 %v1577, 7
        %v1579 = vsub.s32 %v445, %v1578
        %v1580 = vrot.slane %v1493, %v1579
        %v1581 = vsel %vm450, %v1580, %v1576
        %v1582 = vsel %vm515, %v1527, %v1518
        %v1583 = vsel %vm517, %v1536, %v1582
        %v1584 = vsel %vm519, %v1545, %v1583
        %v1585 = vsel %vm521, %v1554, %v1584
        %v1586 = vsel %vm523, %v1563, %v1585
        %v1587 = vsel %vm525, %v1572, %v1586
        %v1588 = vsel %vm527, %v1581, %v1587
        %v1590 = vsub.f32 %v261, %v1588
        %v1591 = vand.u32 2147483647, %v1590
        %v1592 = vsel %vm376, %v1591, 0.0
        %1593 = vadd.xlane.f32.xlu0 %v1592
        %v1594 = vpop.xlane.xlu0 %1593
        %v1595 = vrot.slane %v1594, 4
        %v1596 = vadd.f32 %v1594, %v1595
        %v1597 = vrot.slane %v1596, 2
        %v1598 = vadd.f32 %v1596, %v1597
        %v1599 = vrot.slane %v1598, 1
        %v1600 = vadd.f32 %v1598, %v1599
        %s1601 = vtos %v1600
        %v1602 = vmul.f32 %v1590, %v262
        %v1603 = vadd.f32 %v1339, %v1602
        %v1604 = vsel %vm268, %v1603, 0.0
        %v1606 = vcombine.high %v1604, %v1604
        %v1608 = vunpack.c.l.s4 1966171168
        %v1609 = vunpack.c.0.s8 %v1608
        %v1610 = vlaneseq
        %v1611 = vshrl.u32 %v1610, 7
        %v1612 = vsub.s32 %v1609, %v1611
        %v1613 = vrot.slane %v1604, %v1612
        %v1615 = vunpack.c.l.s4 1966171168
        %v1616 = vunpack.c.0.s8 %v1615
        %v1617 = vlaneseq
        %v1618 = vshrl.u32 %v1617, 7
        %v1619 = vsub.s32 %v1616, %v1618
        %v1620 = vrot.slane %v1606, %v1619
        %v1621 = vcombine.high %v1613, %v1613
        %v1622 = vcombine.high %v1620, %v1620
        %v1624 = vunpack.c.l.s4 1966171168
        %v1625 = vunpack.c.0.s8 %v1624
        %v1626 = vlaneseq
        %v1627 = vshrl.u32 %v1626, 7
        %v1628 = vsub.s32 %v1625, %v1627
        %v1629 = vrot.slane %v1613, %v1628
        %v1631 = vunpack.c.l.s4 1966171168
        %v1632 = vunpack.c.0.s8 %v1631
        %v1633 = vlaneseq
        %v1634 = vshrl.u32 %v1633, 7
        %v1635 = vsub.s32 %v1632, %v1634
        %v1636 = vrot.slane %v1620, %v1635
        %v1638 = vunpack.c.l.s4 1966171168
        %v1639 = vunpack.c.0.s8 %v1638
        %v1640 = vlaneseq
        %v1641 = vshrl.u32 %v1640, 7
        %v1642 = vsub.s32 %v1639, %v1641
        %v1643 = vrot.slane %v1621, %v1642
        %v1645 = vunpack.c.l.s4 1966171168
        %v1646 = vunpack.c.0.s8 %v1645
        %v1647 = vlaneseq
        %v1648 = vshrl.u32 %v1647, 7
        %v1649 = vsub.s32 %v1646, %v1648
        %v1650 = vrot.slane %v1622, %v1649
        %v1651 = vcombine.high %v1629, %v1629
        %v1652 = vcombine.high %v1636, %v1636
        %v1653 = vcombine.high %v1643, %v1643
        %v1654 = vcombine.high %v1650, %v1650
        %v1655 = vlaneseq
        %v1656 = vshrl.u32 %v1655, 7
        %v1657 = vsub.s32 0, %v1656
        %v1658 = vrot.slane %v1629, %v1657
        %v1659 = vlaneseq
        %v1660 = vshrl.u32 %v1659, 7
        %v1661 = vsub.s32 0, %v1660
        %v1662 = vrot.slane %v1643, %v1661
        %v1663 = vlaneseq
        %v1664 = vshrl.u32 %v1663, 7
        %v1665 = vsub.s32 0, %v1664
        %v1666 = vrot.slane %v1651, %v1665
        %v1667 = vlaneseq
        %v1668 = vshrl.u32 %v1667, 7
        %v1669 = vsub.s32 0, %v1668
        %v1670 = vrot.slane %v1653, %v1669
        %v1671 = vlaneseq
        %v1672 = vshrl.u32 %v1671, 7
        %v1673 = vsub.s32 0, %v1672
        %v1674 = vrot.slane %v1636, %v1673
        %v1675 = vlaneseq
        %v1676 = vshrl.u32 %v1675, 7
        %v1677 = vsub.s32 0, %v1676
        %v1678 = vrot.slane %v1650, %v1677
        %v1679 = vlaneseq
        %v1680 = vshrl.u32 %v1679, 7
        %v1681 = vsub.s32 0, %v1680
        %v1682 = vrot.slane %v1652, %v1681
        %v1683 = vlaneseq
        %v1684 = vshrl.u32 %v1683, 7
        %v1685 = vsub.s32 0, %v1684
        %v1686 = vrot.slane %v1654, %v1685
        %v1695 = vmul.f32 %v245, %v1658
        %v1696 = vmul.f32 %v246, %v1658
        %v1697 = vmul.f32 %v247, %v1662
        %v1698 = vmul.f32 %v248, %v1662
        %v1699 = vmul.f32 %v249, %v1666
        %v1700 = vmul.f32 %v250, %v1666
        %v1701 = vmul.f32 %v251, %v1670
        %v1702 = vmul.f32 %v252, %v1670
        %v1703 = vmul.f32 %v253, %v1674
        %v1704 = vmul.f32 %v254, %v1674
        %v1705 = vmul.f32 %v255, %v1678
        %v1706 = vmul.f32 %v256, %v1678
        %v1707 = vmul.f32 %v257, %v1682
        %v1708 = vmul.f32 %v258, %v1682
        %v1709 = vmul.f32 %v259, %v1686
        %v1710 = vmul.f32 %v260, %v1686
        %v1711 = vsel %vm376, %v1695, 0.0
        %1712 = vadd.xlane.f32.xlu0 %v1711
        %v1713 = vpop.xlane.xlu0 %1712
        %v1714 = vsel %vm376, %v1696, 0.0
        %1715 = vadd.xlane.f32.xlu0 %v1714
        %v1716 = vpop.xlane.xlu0 %1715
        %v1717 = vsel %vm376, %v1697, 0.0
        %1718 = vadd.xlane.f32.xlu0 %v1717
        %v1719 = vpop.xlane.xlu0 %1718
        %v1720 = vsel %vm376, %v1698, 0.0
        %1721 = vadd.xlane.f32.xlu0 %v1720
        %v1722 = vpop.xlane.xlu0 %1721
        %v1723 = vsel %vm376, %v1699, 0.0
        %1724 = vadd.xlane.f32.xlu0 %v1723
        %v1725 = vpop.xlane.xlu0 %1724
        %v1726 = vsel %vm376, %v1700, 0.0
        %1727 = vadd.xlane.f32.xlu0 %v1726
        %v1728 = vpop.xlane.xlu0 %1727
        %v1729 = vsel %vm376, %v1701, 0.0
        %1730 = vadd.xlane.f32.xlu0 %v1729
        %v1731 = vpop.xlane.xlu0 %1730
        %v1732 = vsel %vm376, %v1702, 0.0
        %1733 = vadd.xlane.f32.xlu0 %v1732
        %v1734 = vpop.xlane.xlu0 %1733
        %v1735 = vsel %vm376, %v1703, 0.0
        %1736 = vadd.xlane.f32.xlu0 %v1735
        %v1737 = vpop.xlane.xlu0 %1736
        %v1738 = vsel %vm376, %v1704, 0.0
        %1739 = vadd.xlane.f32.xlu0 %v1738
        %v1740 = vpop.xlane.xlu0 %1739
        %v1741 = vsel %vm376, %v1705, 0.0
        %1742 = vadd.xlane.f32.xlu0 %v1741
        %v1743 = vpop.xlane.xlu0 %1742
        %v1744 = vsel %vm376, %v1706, 0.0
        %1745 = vadd.xlane.f32.xlu0 %v1744
        %v1746 = vpop.xlane.xlu0 %1745
        %v1747 = vsel %vm376, %v1707, 0.0
        %1748 = vadd.xlane.f32.xlu0 %v1747
        %v1749 = vpop.xlane.xlu0 %1748
        %v1750 = vsel %vm376, %v1708, 0.0
        %1751 = vadd.xlane.f32.xlu0 %v1750
        %v1752 = vpop.xlane.xlu0 %1751
        %v1753 = vsel %vm376, %v1709, 0.0
        %1754 = vadd.xlane.f32.xlu0 %v1753
        %v1755 = vpop.xlane.xlu0 %1754
        %v1756 = vsel %vm376, %v1710, 0.0
        %1757 = vadd.xlane.f32.xlu0 %v1756
        %v1758 = vpop.xlane.xlu0 %1757
        %v1775 = vlaneseq
        %v1776 = vshrl.u32 %v1775, 7
        %v1777 = vsub.s32 %v264, %v1776
        %v1778 = vrot.slane %v1713, %v1777
        %v1779 = vlaneseq
        %v1780 = vshrl.u32 %v1779, 7
        %v1781 = vsub.s32 %v445, %v1780
        %v1782 = vrot.slane %v1716, %v1781
        %v1783 = vsel %vm450, %v1782, %v1778
        %v1784 = vlaneseq
        %v1785 = vshrl.u32 %v1784, 7
        %v1786 = vsub.s32 %v264, %v1785
        %v1787 = vrot.slane %v1719, %v1786
        %v1788 = vlaneseq
        %v1789 = vshrl.u32 %v1788, 7
        %v1790 = vsub.s32 %v445, %v1789
        %v1791 = vrot.slane %v1722, %v1790
        %v1792 = vsel %vm450, %v1791, %v1787
        %v1793 = vlaneseq
        %v1794 = vshrl.u32 %v1793, 7
        %v1795 = vsub.s32 %v264, %v1794
        %v1796 = vrot.slane %v1725, %v1795
        %v1797 = vlaneseq
        %v1798 = vshrl.u32 %v1797, 7
        %v1799 = vsub.s32 %v445, %v1798
        %v1800 = vrot.slane %v1728, %v1799
        %v1801 = vsel %vm450, %v1800, %v1796
        %v1802 = vlaneseq
        %v1803 = vshrl.u32 %v1802, 7
        %v1804 = vsub.s32 %v264, %v1803
        %v1805 = vrot.slane %v1731, %v1804
        %v1806 = vlaneseq
        %v1807 = vshrl.u32 %v1806, 7
        %v1808 = vsub.s32 %v445, %v1807
        %v1809 = vrot.slane %v1734, %v1808
        %v1810 = vsel %vm450, %v1809, %v1805
        %v1811 = vlaneseq
        %v1812 = vshrl.u32 %v1811, 7
        %v1813 = vsub.s32 %v264, %v1812
        %v1814 = vrot.slane %v1737, %v1813
        %v1815 = vlaneseq
        %v1816 = vshrl.u32 %v1815, 7
        %v1817 = vsub.s32 %v445, %v1816
        %v1818 = vrot.slane %v1740, %v1817
        %v1819 = vsel %vm450, %v1818, %v1814
        %v1820 = vlaneseq
        %v1821 = vshrl.u32 %v1820, 7
        %v1822 = vsub.s32 %v264, %v1821
        %v1823 = vrot.slane %v1743, %v1822
        %v1824 = vlaneseq
        %v1825 = vshrl.u32 %v1824, 7
        %v1826 = vsub.s32 %v445, %v1825
        %v1827 = vrot.slane %v1746, %v1826
        %v1828 = vsel %vm450, %v1827, %v1823
        %v1829 = vlaneseq
        %v1830 = vshrl.u32 %v1829, 7
        %v1831 = vsub.s32 %v264, %v1830
        %v1832 = vrot.slane %v1749, %v1831
        %v1833 = vlaneseq
        %v1834 = vshrl.u32 %v1833, 7
        %v1835 = vsub.s32 %v445, %v1834
        %v1836 = vrot.slane %v1752, %v1835
        %v1837 = vsel %vm450, %v1836, %v1832
        %v1838 = vlaneseq
        %v1839 = vshrl.u32 %v1838, 7
        %v1840 = vsub.s32 %v264, %v1839
        %v1841 = vrot.slane %v1755, %v1840
        %v1842 = vlaneseq
        %v1843 = vshrl.u32 %v1842, 7
        %v1844 = vsub.s32 %v445, %v1843
        %v1845 = vrot.slane %v1758, %v1844
        %v1846 = vsel %vm450, %v1845, %v1841
        %v1847 = vsel %vm515, %v1792, %v1783
        %v1848 = vsel %vm517, %v1801, %v1847
        %v1849 = vsel %vm519, %v1810, %v1848
        %v1850 = vsel %vm521, %v1819, %v1849
        %v1851 = vsel %vm523, %v1828, %v1850
        %v1852 = vsel %vm525, %v1837, %v1851
        %v1853 = vsel %vm527, %v1846, %v1852
        %v1855 = vsub.f32 %v261, %v1853
        %v1856 = vand.u32 2147483647, %v1855
        %v1857 = vsel %vm376, %v1856, 0.0
        %1858 = vadd.xlane.f32.xlu0 %v1857
        %v1859 = vpop.xlane.xlu0 %1858
        %v1860 = vrot.slane %v1859, 4
        %v1861 = vadd.f32 %v1859, %v1860
        %v1862 = vrot.slane %v1861, 2
        %v1863 = vadd.f32 %v1861, %v1862
        %v1864 = vrot.slane %v1863, 1
        %v1865 = vadd.f32 %v1863, %v1864
        %s1866 = vtos %v1865
        %v1867 = vmul.f32 %v1855, %v262
        %v1868 = vadd.f32 %v1604, %v1867
        %v1869 = vsel %vm268, %v1868, 0.0
        %v1871 = vcombine.high %v1869, %v1869
        %v1873 = vunpack.c.l.s4 1966171168
        %v1874 = vunpack.c.0.s8 %v1873
        %v1875 = vlaneseq
        %v1876 = vshrl.u32 %v1875, 7
        %v1877 = vsub.s32 %v1874, %v1876
        %v1878 = vrot.slane %v1869, %v1877
        %v1880 = vunpack.c.l.s4 1966171168
        %v1881 = vunpack.c.0.s8 %v1880
        %v1882 = vlaneseq
        %v1883 = vshrl.u32 %v1882, 7
        %v1884 = vsub.s32 %v1881, %v1883
        %v1885 = vrot.slane %v1871, %v1884
        %v1886 = vcombine.high %v1878, %v1878
        %v1887 = vcombine.high %v1885, %v1885
        %v1889 = vunpack.c.l.s4 1966171168
        %v1890 = vunpack.c.0.s8 %v1889
        %v1891 = vlaneseq
        %v1892 = vshrl.u32 %v1891, 7
        %v1893 = vsub.s32 %v1890, %v1892
        %v1894 = vrot.slane %v1878, %v1893
        %v1896 = vunpack.c.l.s4 1966171168
        %v1897 = vunpack.c.0.s8 %v1896
        %v1898 = vlaneseq
        %v1899 = vshrl.u32 %v1898, 7
        %v1900 = vsub.s32 %v1897, %v1899
        %v1901 = vrot.slane %v1885, %v1900
        %v1903 = vunpack.c.l.s4 1966171168
        %v1904 = vunpack.c.0.s8 %v1903
        %v1905 = vlaneseq
        %v1906 = vshrl.u32 %v1905, 7
        %v1907 = vsub.s32 %v1904, %v1906
        %v1908 = vrot.slane %v1886, %v1907
        %v1910 = vunpack.c.l.s4 1966171168
        %v1911 = vunpack.c.0.s8 %v1910
        %v1912 = vlaneseq
        %v1913 = vshrl.u32 %v1912, 7
        %v1914 = vsub.s32 %v1911, %v1913
        %v1915 = vrot.slane %v1887, %v1914
        %v1916 = vcombine.high %v1894, %v1894
        %v1917 = vcombine.high %v1901, %v1901
        %v1918 = vcombine.high %v1908, %v1908
        %v1919 = vcombine.high %v1915, %v1915
        %v1920 = vlaneseq
        %v1921 = vshrl.u32 %v1920, 7
        %v1922 = vsub.s32 0, %v1921
        %v1923 = vrot.slane %v1894, %v1922
        %v1924 = vlaneseq
        %v1925 = vshrl.u32 %v1924, 7
        %v1926 = vsub.s32 0, %v1925
        %v1927 = vrot.slane %v1908, %v1926
        %v1928 = vlaneseq
        %v1929 = vshrl.u32 %v1928, 7
        %v1930 = vsub.s32 0, %v1929
        %v1931 = vrot.slane %v1916, %v1930
        %v1932 = vlaneseq
        %v1933 = vshrl.u32 %v1932, 7
        %v1934 = vsub.s32 0, %v1933
        %v1935 = vrot.slane %v1918, %v1934
        %v1936 = vlaneseq
        %v1937 = vshrl.u32 %v1936, 7
        %v1938 = vsub.s32 0, %v1937
        %v1939 = vrot.slane %v1901, %v1938
        %v1940 = vlaneseq
        %v1941 = vshrl.u32 %v1940, 7
        %v1942 = vsub.s32 0, %v1941
        %v1943 = vrot.slane %v1915, %v1942
        %v1944 = vlaneseq
        %v1945 = vshrl.u32 %v1944, 7
        %v1946 = vsub.s32 0, %v1945
        %v1947 = vrot.slane %v1917, %v1946
        %v1948 = vlaneseq
        %v1949 = vshrl.u32 %v1948, 7
        %v1950 = vsub.s32 0, %v1949
        %v1951 = vrot.slane %v1919, %v1950
        %v1960 = vmul.f32 %v245, %v1923
        %v1961 = vmul.f32 %v246, %v1923
        %v1962 = vmul.f32 %v247, %v1927
        %v1963 = vmul.f32 %v248, %v1927
        %v1964 = vmul.f32 %v249, %v1931
        %v1965 = vmul.f32 %v250, %v1931
        %v1966 = vmul.f32 %v251, %v1935
        %v1967 = vmul.f32 %v252, %v1935
        %v1968 = vmul.f32 %v253, %v1939
        %v1969 = vmul.f32 %v254, %v1939
        %v1970 = vmul.f32 %v255, %v1943
        %v1971 = vmul.f32 %v256, %v1943
        %v1972 = vmul.f32 %v257, %v1947
        %v1973 = vmul.f32 %v258, %v1947
        %v1974 = vmul.f32 %v259, %v1951
        %v1975 = vmul.f32 %v260, %v1951
        %v1976 = vsel %vm376, %v1960, 0.0
        %1977 = vadd.xlane.f32.xlu0 %v1976
        %v1978 = vpop.xlane.xlu0 %1977
        %v1979 = vsel %vm376, %v1961, 0.0
        %1980 = vadd.xlane.f32.xlu0 %v1979
        %v1981 = vpop.xlane.xlu0 %1980
        %v1982 = vsel %vm376, %v1962, 0.0
        %1983 = vadd.xlane.f32.xlu0 %v1982
        %v1984 = vpop.xlane.xlu0 %1983
        %v1985 = vsel %vm376, %v1963, 0.0
        %1986 = vadd.xlane.f32.xlu0 %v1985
        %v1987 = vpop.xlane.xlu0 %1986
        %v1988 = vsel %vm376, %v1964, 0.0
        %1989 = vadd.xlane.f32.xlu0 %v1988
        %v1990 = vpop.xlane.xlu0 %1989
        %v1991 = vsel %vm376, %v1965, 0.0
        %1992 = vadd.xlane.f32.xlu0 %v1991
        %v1993 = vpop.xlane.xlu0 %1992
        %v1994 = vsel %vm376, %v1966, 0.0
        %1995 = vadd.xlane.f32.xlu0 %v1994
        %v1996 = vpop.xlane.xlu0 %1995
        %v1997 = vsel %vm376, %v1967, 0.0
        %1998 = vadd.xlane.f32.xlu0 %v1997
        %v1999 = vpop.xlane.xlu0 %1998
        %v2000 = vsel %vm376, %v1968, 0.0
        %2001 = vadd.xlane.f32.xlu0 %v2000
        %v2002 = vpop.xlane.xlu0 %2001
        %v2003 = vsel %vm376, %v1969, 0.0
        %2004 = vadd.xlane.f32.xlu0 %v2003
        %v2005 = vpop.xlane.xlu0 %2004
        %v2006 = vsel %vm376, %v1970, 0.0
        %2007 = vadd.xlane.f32.xlu0 %v2006
        %v2008 = vpop.xlane.xlu0 %2007
        %v2009 = vsel %vm376, %v1971, 0.0
        %2010 = vadd.xlane.f32.xlu0 %v2009
        %v2011 = vpop.xlane.xlu0 %2010
        %v2012 = vsel %vm376, %v1972, 0.0
        %2013 = vadd.xlane.f32.xlu0 %v2012
        %v2014 = vpop.xlane.xlu0 %2013
        %v2015 = vsel %vm376, %v1973, 0.0
        %2016 = vadd.xlane.f32.xlu0 %v2015
        %v2017 = vpop.xlane.xlu0 %2016
        %v2018 = vsel %vm376, %v1974, 0.0
        %2019 = vadd.xlane.f32.xlu0 %v2018
        %v2020 = vpop.xlane.xlu0 %2019
        %v2021 = vsel %vm376, %v1975, 0.0
        %2022 = vadd.xlane.f32.xlu0 %v2021
        %v2023 = vpop.xlane.xlu0 %2022
        %v2040 = vlaneseq
        %v2041 = vshrl.u32 %v2040, 7
        %v2042 = vsub.s32 %v264, %v2041
        %v2043 = vrot.slane %v1978, %v2042
        %v2044 = vlaneseq
        %v2045 = vshrl.u32 %v2044, 7
        %v2046 = vsub.s32 %v445, %v2045
        %v2047 = vrot.slane %v1981, %v2046
        %v2048 = vsel %vm450, %v2047, %v2043
        %v2049 = vlaneseq
        %v2050 = vshrl.u32 %v2049, 7
        %v2051 = vsub.s32 %v264, %v2050
        %v2052 = vrot.slane %v1984, %v2051
        %v2053 = vlaneseq
        %v2054 = vshrl.u32 %v2053, 7
        %v2055 = vsub.s32 %v445, %v2054
        %v2056 = vrot.slane %v1987, %v2055
        %v2057 = vsel %vm450, %v2056, %v2052
        %v2058 = vlaneseq
        %v2059 = vshrl.u32 %v2058, 7
        %v2060 = vsub.s32 %v264, %v2059
        %v2061 = vrot.slane %v1990, %v2060
        %v2062 = vlaneseq
        %v2063 = vshrl.u32 %v2062, 7
        %v2064 = vsub.s32 %v445, %v2063
        %v2065 = vrot.slane %v1993, %v2064
        %v2066 = vsel %vm450, %v2065, %v2061
        %v2067 = vlaneseq
        %v2068 = vshrl.u32 %v2067, 7
        %v2069 = vsub.s32 %v264, %v2068
        %v2070 = vrot.slane %v1996, %v2069
        %v2071 = vlaneseq
        %v2072 = vshrl.u32 %v2071, 7
        %v2073 = vsub.s32 %v445, %v2072
        %v2074 = vrot.slane %v1999, %v2073
        %v2075 = vsel %vm450, %v2074, %v2070
        %v2076 = vlaneseq
        %v2077 = vshrl.u32 %v2076, 7
        %v2078 = vsub.s32 %v264, %v2077
        %v2079 = vrot.slane %v2002, %v2078
        %v2080 = vlaneseq
        %v2081 = vshrl.u32 %v2080, 7
        %v2082 = vsub.s32 %v445, %v2081
        %v2083 = vrot.slane %v2005, %v2082
        %v2084 = vsel %vm450, %v2083, %v2079
        %v2085 = vlaneseq
        %v2086 = vshrl.u32 %v2085, 7
        %v2087 = vsub.s32 %v264, %v2086
        %v2088 = vrot.slane %v2008, %v2087
        %v2089 = vlaneseq
        %v2090 = vshrl.u32 %v2089, 7
        %v2091 = vsub.s32 %v445, %v2090
        %v2092 = vrot.slane %v2011, %v2091
        %v2093 = vsel %vm450, %v2092, %v2088
        %v2094 = vlaneseq
        %v2095 = vshrl.u32 %v2094, 7
        %v2096 = vsub.s32 %v264, %v2095
        %v2097 = vrot.slane %v2014, %v2096
        %v2098 = vlaneseq
        %v2099 = vshrl.u32 %v2098, 7
        %v2100 = vsub.s32 %v445, %v2099
        %v2101 = vrot.slane %v2017, %v2100
        %v2102 = vsel %vm450, %v2101, %v2097
        %v2103 = vlaneseq
        %v2104 = vshrl.u32 %v2103, 7
        %v2105 = vsub.s32 %v264, %v2104
        %v2106 = vrot.slane %v2020, %v2105
        %v2107 = vlaneseq
        %v2108 = vshrl.u32 %v2107, 7
        %v2109 = vsub.s32 %v445, %v2108
        %v2110 = vrot.slane %v2023, %v2109
        %v2111 = vsel %vm450, %v2110, %v2106
        %v2112 = vsel %vm515, %v2057, %v2048
        %v2113 = vsel %vm517, %v2066, %v2112
        %v2114 = vsel %vm519, %v2075, %v2113
        %v2115 = vsel %vm521, %v2084, %v2114
        %v2116 = vsel %vm523, %v2093, %v2115
        %v2117 = vsel %vm525, %v2102, %v2116
        %v2118 = vsel %vm527, %v2111, %v2117
        %v2120 = vsub.f32 %v261, %v2118
        %v2121 = vand.u32 2147483647, %v2120
        %v2122 = vsel %vm376, %v2121, 0.0
        %2123 = vadd.xlane.f32.xlu0 %v2122
        %v2124 = vpop.xlane.xlu0 %2123
        %v2125 = vrot.slane %v2124, 4
        %v2126 = vadd.f32 %v2124, %v2125
        %v2127 = vrot.slane %v2126, 2
        %v2128 = vadd.f32 %v2126, %v2127
        %v2129 = vrot.slane %v2128, 1
        %v2130 = vadd.f32 %v2128, %v2129
        %s2131 = vtos %v2130
        %v2132 = vmul.f32 %v2120, %v262
        %v2133 = vadd.f32 %v1869, %v2132
        %v2134 = vsel %vm268, %v2133, 0.0
        %v2136 = vcombine.high %v2134, %v2134
        %v2138 = vunpack.c.l.s4 1966171168
        %v2139 = vunpack.c.0.s8 %v2138
        %v2140 = vlaneseq
        %v2141 = vshrl.u32 %v2140, 7
        %v2142 = vsub.s32 %v2139, %v2141
        %v2143 = vrot.slane %v2134, %v2142
        %v2145 = vunpack.c.l.s4 1966171168
        %v2146 = vunpack.c.0.s8 %v2145
        %v2147 = vlaneseq
        %v2148 = vshrl.u32 %v2147, 7
        %v2149 = vsub.s32 %v2146, %v2148
        %v2150 = vrot.slane %v2136, %v2149
        %v2151 = vcombine.high %v2143, %v2143
        %v2152 = vcombine.high %v2150, %v2150
        %v2154 = vunpack.c.l.s4 1966171168
        %v2155 = vunpack.c.0.s8 %v2154
        %v2156 = vlaneseq
        %v2157 = vshrl.u32 %v2156, 7
        %v2158 = vsub.s32 %v2155, %v2157
        %v2159 = vrot.slane %v2143, %v2158
        %v2161 = vunpack.c.l.s4 1966171168
        %v2162 = vunpack.c.0.s8 %v2161
        %v2163 = vlaneseq
        %v2164 = vshrl.u32 %v2163, 7
        %v2165 = vsub.s32 %v2162, %v2164
        %v2166 = vrot.slane %v2150, %v2165
        %v2168 = vunpack.c.l.s4 1966171168
        %v2169 = vunpack.c.0.s8 %v2168
        %v2170 = vlaneseq
        %v2171 = vshrl.u32 %v2170, 7
        %v2172 = vsub.s32 %v2169, %v2171
        %v2173 = vrot.slane %v2151, %v2172
        %v2175 = vunpack.c.l.s4 1966171168
        %v2176 = vunpack.c.0.s8 %v2175
        %v2177 = vlaneseq
        %v2178 = vshrl.u32 %v2177, 7
        %v2179 = vsub.s32 %v2176, %v2178
        %v2180 = vrot.slane %v2152, %v2179
        %v2181 = vcombine.high %v2159, %v2159
        %v2182 = vcombine.high %v2166, %v2166
        %v2183 = vcombine.high %v2173, %v2173
        %v2184 = vcombine.high %v2180, %v2180
        %v2185 = vlaneseq
        %v2186 = vshrl.u32 %v2185, 7
        %v2187 = vsub.s32 0, %v2186
        %v2188 = vrot.slane %v2159, %v2187
        %v2189 = vlaneseq
        %v2190 = vshrl.u32 %v2189, 7
        %v2191 = vsub.s32 0, %v2190
        %v2192 = vrot.slane %v2173, %v2191
        %v2193 = vlaneseq
        %v2194 = vshrl.u32 %v2193, 7
        %v2195 = vsub.s32 0, %v2194
        %v2196 = vrot.slane %v2181, %v2195
        %v2197 = vlaneseq
        %v2198 = vshrl.u32 %v2197, 7
        %v2199 = vsub.s32 0, %v2198
        %v2200 = vrot.slane %v2183, %v2199
        %v2201 = vlaneseq
        %v2202 = vshrl.u32 %v2201, 7
        %v2203 = vsub.s32 0, %v2202
        %v2204 = vrot.slane %v2166, %v2203
        %v2205 = vlaneseq
        %v2206 = vshrl.u32 %v2205, 7
        %v2207 = vsub.s32 0, %v2206
        %v2208 = vrot.slane %v2180, %v2207
        %v2209 = vlaneseq
        %v2210 = vshrl.u32 %v2209, 7
        %v2211 = vsub.s32 0, %v2210
        %v2212 = vrot.slane %v2182, %v2211
        %v2213 = vlaneseq
        %v2214 = vshrl.u32 %v2213, 7
        %v2215 = vsub.s32 0, %v2214
        %v2216 = vrot.slane %v2184, %v2215
        %v2225 = vmul.f32 %v245, %v2188
        %v2226 = vmul.f32 %v246, %v2188
        %v2227 = vmul.f32 %v247, %v2192
        %v2228 = vmul.f32 %v248, %v2192
        %v2229 = vmul.f32 %v249, %v2196
        %v2230 = vmul.f32 %v250, %v2196
        %v2231 = vmul.f32 %v251, %v2200
        %v2232 = vmul.f32 %v252, %v2200
        %v2233 = vmul.f32 %v253, %v2204
        %v2234 = vmul.f32 %v254, %v2204
        %v2235 = vmul.f32 %v255, %v2208
        %v2236 = vmul.f32 %v256, %v2208
        %v2237 = vmul.f32 %v257, %v2212
        %v2238 = vmul.f32 %v258, %v2212
        %v2239 = vmul.f32 %v259, %v2216
        %v2240 = vmul.f32 %v260, %v2216
        %v2241 = vsel %vm376, %v2225, 0.0
        %2242 = vadd.xlane.f32.xlu0 %v2241
        %v2243 = vpop.xlane.xlu0 %2242
        %v2244 = vsel %vm376, %v2226, 0.0
        %2245 = vadd.xlane.f32.xlu0 %v2244
        %v2246 = vpop.xlane.xlu0 %2245
        %v2247 = vsel %vm376, %v2227, 0.0
        %2248 = vadd.xlane.f32.xlu0 %v2247
        %v2249 = vpop.xlane.xlu0 %2248
        %v2250 = vsel %vm376, %v2228, 0.0
        %2251 = vadd.xlane.f32.xlu0 %v2250
        %v2252 = vpop.xlane.xlu0 %2251
        %v2253 = vsel %vm376, %v2229, 0.0
        %2254 = vadd.xlane.f32.xlu0 %v2253
        %v2255 = vpop.xlane.xlu0 %2254
        %v2256 = vsel %vm376, %v2230, 0.0
        %2257 = vadd.xlane.f32.xlu0 %v2256
        %v2258 = vpop.xlane.xlu0 %2257
        %v2259 = vsel %vm376, %v2231, 0.0
        %2260 = vadd.xlane.f32.xlu0 %v2259
        %v2261 = vpop.xlane.xlu0 %2260
        %v2262 = vsel %vm376, %v2232, 0.0
        %2263 = vadd.xlane.f32.xlu0 %v2262
        %v2264 = vpop.xlane.xlu0 %2263
        %v2265 = vsel %vm376, %v2233, 0.0
        %2266 = vadd.xlane.f32.xlu0 %v2265
        %v2267 = vpop.xlane.xlu0 %2266
        %v2268 = vsel %vm376, %v2234, 0.0
        %2269 = vadd.xlane.f32.xlu0 %v2268
        %v2270 = vpop.xlane.xlu0 %2269
        %v2271 = vsel %vm376, %v2235, 0.0
        %2272 = vadd.xlane.f32.xlu0 %v2271
        %v2273 = vpop.xlane.xlu0 %2272
        %v2274 = vsel %vm376, %v2236, 0.0
        %2275 = vadd.xlane.f32.xlu0 %v2274
        %v2276 = vpop.xlane.xlu0 %2275
        %v2277 = vsel %vm376, %v2237, 0.0
        %2278 = vadd.xlane.f32.xlu0 %v2277
        %v2279 = vpop.xlane.xlu0 %2278
        %v2280 = vsel %vm376, %v2238, 0.0
        %2281 = vadd.xlane.f32.xlu0 %v2280
        %v2282 = vpop.xlane.xlu0 %2281
        %v2283 = vsel %vm376, %v2239, 0.0
        %2284 = vadd.xlane.f32.xlu0 %v2283
        %v2285 = vpop.xlane.xlu0 %2284
        %v2286 = vsel %vm376, %v2240, 0.0
        %2287 = vadd.xlane.f32.xlu0 %v2286
        %v2288 = vpop.xlane.xlu0 %2287
        %v2305 = vlaneseq
        %v2306 = vshrl.u32 %v2305, 7
        %v2307 = vsub.s32 %v264, %v2306
        %v2308 = vrot.slane %v2243, %v2307
        %v2309 = vlaneseq
        %v2310 = vshrl.u32 %v2309, 7
        %v2311 = vsub.s32 %v445, %v2310
        %v2312 = vrot.slane %v2246, %v2311
        %v2313 = vsel %vm450, %v2312, %v2308
        %v2314 = vlaneseq
        %v2315 = vshrl.u32 %v2314, 7
        %v2316 = vsub.s32 %v264, %v2315
        %v2317 = vrot.slane %v2249, %v2316
        %v2318 = vlaneseq
        %v2319 = vshrl.u32 %v2318, 7
        %v2320 = vsub.s32 %v445, %v2319
        %v2321 = vrot.slane %v2252, %v2320
        %v2322 = vsel %vm450, %v2321, %v2317
        %v2323 = vlaneseq
        %v2324 = vshrl.u32 %v2323, 7
        %v2325 = vsub.s32 %v264, %v2324
        %v2326 = vrot.slane %v2255, %v2325
        %v2327 = vlaneseq
        %v2328 = vshrl.u32 %v2327, 7
        %v2329 = vsub.s32 %v445, %v2328
        %v2330 = vrot.slane %v2258, %v2329
        %v2331 = vsel %vm450, %v2330, %v2326
        %v2332 = vlaneseq
        %v2333 = vshrl.u32 %v2332, 7
        %v2334 = vsub.s32 %v264, %v2333
        %v2335 = vrot.slane %v2261, %v2334
        %v2336 = vlaneseq
        %v2337 = vshrl.u32 %v2336, 7
        %v2338 = vsub.s32 %v445, %v2337
        %v2339 = vrot.slane %v2264, %v2338
        %v2340 = vsel %vm450, %v2339, %v2335
        %v2341 = vlaneseq
        %v2342 = vshrl.u32 %v2341, 7
        %v2343 = vsub.s32 %v264, %v2342
        %v2344 = vrot.slane %v2267, %v2343
        %v2345 = vlaneseq
        %v2346 = vshrl.u32 %v2345, 7
        %v2347 = vsub.s32 %v445, %v2346
        %v2348 = vrot.slane %v2270, %v2347
        %v2349 = vsel %vm450, %v2348, %v2344
        %v2350 = vlaneseq
        %v2351 = vshrl.u32 %v2350, 7
        %v2352 = vsub.s32 %v264, %v2351
        %v2353 = vrot.slane %v2273, %v2352
        %v2354 = vlaneseq
        %v2355 = vshrl.u32 %v2354, 7
        %v2356 = vsub.s32 %v445, %v2355
        %v2357 = vrot.slane %v2276, %v2356
        %v2358 = vsel %vm450, %v2357, %v2353
        %v2359 = vlaneseq
        %v2360 = vshrl.u32 %v2359, 7
        %v2361 = vsub.s32 %v264, %v2360
        %v2362 = vrot.slane %v2279, %v2361
        %v2363 = vlaneseq
        %v2364 = vshrl.u32 %v2363, 7
        %v2365 = vsub.s32 %v445, %v2364
        %v2366 = vrot.slane %v2282, %v2365
        %v2367 = vsel %vm450, %v2366, %v2362
        %v2368 = vlaneseq
        %v2369 = vshrl.u32 %v2368, 7
        %v2370 = vsub.s32 %v264, %v2369
        %v2371 = vrot.slane %v2285, %v2370
        %v2372 = vlaneseq
        %v2373 = vshrl.u32 %v2372, 7
        %v2374 = vsub.s32 %v445, %v2373
        %v2375 = vrot.slane %v2288, %v2374
        %v2376 = vsel %vm450, %v2375, %v2371
        %v2377 = vsel %vm515, %v2322, %v2313
        %v2378 = vsel %vm517, %v2331, %v2377
        %v2379 = vsel %vm519, %v2340, %v2378
        %v2380 = vsel %vm521, %v2349, %v2379
        %v2381 = vsel %vm523, %v2358, %v2380
        %v2382 = vsel %vm525, %v2367, %v2381
        %v2383 = vsel %vm527, %v2376, %v2382
        %v2385 = vsub.f32 %v261, %v2383
        %v2386 = vand.u32 2147483647, %v2385
        %v2387 = vsel %vm376, %v2386, 0.0
        %2388 = vadd.xlane.f32.xlu0 %v2387
        %v2389 = vpop.xlane.xlu0 %2388
        %v2390 = vrot.slane %v2389, 4
        %v2391 = vadd.f32 %v2389, %v2390
        %v2392 = vrot.slane %v2391, 2
        %v2393 = vadd.f32 %v2391, %v2392
        %v2394 = vrot.slane %v2393, 1
        %v2395 = vadd.f32 %v2393, %v2394
        %s2396 = vtos %v2395
        %v2397 = vmul.f32 %v2385, %v262
        %v2398 = vadd.f32 %v2134, %v2397
        %v2399 = vsel %vm268, %v2398, 0.0
        %v2401 = vcombine.high %v2399, %v2399
        %v2403 = vunpack.c.l.s4 1966171168
        %v2404 = vunpack.c.0.s8 %v2403
        %v2405 = vlaneseq
        %v2406 = vshrl.u32 %v2405, 7
        %v2407 = vsub.s32 %v2404, %v2406
        %v2408 = vrot.slane %v2399, %v2407
        %v2410 = vunpack.c.l.s4 1966171168
        %v2411 = vunpack.c.0.s8 %v2410
        %v2412 = vlaneseq
        %v2413 = vshrl.u32 %v2412, 7
        %v2414 = vsub.s32 %v2411, %v2413
        %v2415 = vrot.slane %v2401, %v2414
        %v2416 = vcombine.high %v2408, %v2408
        %v2417 = vcombine.high %v2415, %v2415
        %v2419 = vunpack.c.l.s4 1966171168
        %v2420 = vunpack.c.0.s8 %v2419
        %v2421 = vlaneseq
        %v2422 = vshrl.u32 %v2421, 7
        %v2423 = vsub.s32 %v2420, %v2422
        %v2424 = vrot.slane %v2408, %v2423
        %v2426 = vunpack.c.l.s4 1966171168
        %v2427 = vunpack.c.0.s8 %v2426
        %v2428 = vlaneseq
        %v2429 = vshrl.u32 %v2428, 7
        %v2430 = vsub.s32 %v2427, %v2429
        %v2431 = vrot.slane %v2415, %v2430
        %v2433 = vunpack.c.l.s4 1966171168
        %v2434 = vunpack.c.0.s8 %v2433
        %v2435 = vlaneseq
        %v2436 = vshrl.u32 %v2435, 7
        %v2437 = vsub.s32 %v2434, %v2436
        %v2438 = vrot.slane %v2416, %v2437
        %v2440 = vunpack.c.l.s4 1966171168
        %v2441 = vunpack.c.0.s8 %v2440
        %v2442 = vlaneseq
        %v2443 = vshrl.u32 %v2442, 7
        %v2444 = vsub.s32 %v2441, %v2443
        %v2445 = vrot.slane %v2417, %v2444
        %v2446 = vcombine.high %v2424, %v2424
        %v2447 = vcombine.high %v2431, %v2431
        %v2448 = vcombine.high %v2438, %v2438
        %v2449 = vcombine.high %v2445, %v2445
        %v2450 = vlaneseq
        %v2451 = vshrl.u32 %v2450, 7
        %v2452 = vsub.s32 0, %v2451
        %v2453 = vrot.slane %v2424, %v2452
        %v2454 = vlaneseq
        %v2455 = vshrl.u32 %v2454, 7
        %v2456 = vsub.s32 0, %v2455
        %v2457 = vrot.slane %v2438, %v2456
        %v2458 = vlaneseq
        %v2459 = vshrl.u32 %v2458, 7
        %v2460 = vsub.s32 0, %v2459
        %v2461 = vrot.slane %v2446, %v2460
        %v2462 = vlaneseq
        %v2463 = vshrl.u32 %v2462, 7
        %v2464 = vsub.s32 0, %v2463
        %v2465 = vrot.slane %v2448, %v2464
        %v2466 = vlaneseq
        %v2467 = vshrl.u32 %v2466, 7
        %v2468 = vsub.s32 0, %v2467
        %v2469 = vrot.slane %v2431, %v2468
        %v2470 = vlaneseq
        %v2471 = vshrl.u32 %v2470, 7
        %v2472 = vsub.s32 0, %v2471
        %v2473 = vrot.slane %v2445, %v2472
        %v2474 = vlaneseq
        %v2475 = vshrl.u32 %v2474, 7
        %v2476 = vsub.s32 0, %v2475
        %v2477 = vrot.slane %v2447, %v2476
        %v2478 = vlaneseq
        %v2479 = vshrl.u32 %v2478, 7
        %v2480 = vsub.s32 0, %v2479
        %v2481 = vrot.slane %v2449, %v2480
        %v2490 = vmul.f32 %v245, %v2453
        %v2491 = vmul.f32 %v246, %v2453
        %v2492 = vmul.f32 %v247, %v2457
        %v2493 = vmul.f32 %v248, %v2457
        %v2494 = vmul.f32 %v249, %v2461
        %v2495 = vmul.f32 %v250, %v2461
        %v2496 = vmul.f32 %v251, %v2465
        %v2497 = vmul.f32 %v252, %v2465
        %v2498 = vmul.f32 %v253, %v2469
        %v2499 = vmul.f32 %v254, %v2469
        %v2500 = vmul.f32 %v255, %v2473
        %v2501 = vmul.f32 %v256, %v2473
        %v2502 = vmul.f32 %v257, %v2477
        %v2503 = vmul.f32 %v258, %v2477
        %v2504 = vmul.f32 %v259, %v2481
        %v2505 = vmul.f32 %v260, %v2481
        %v2506 = vsel %vm376, %v2490, 0.0
        %2507 = vadd.xlane.f32.xlu0 %v2506
        %v2508 = vpop.xlane.xlu0 %2507
        %v2509 = vsel %vm376, %v2491, 0.0
        %2510 = vadd.xlane.f32.xlu0 %v2509
        %v2511 = vpop.xlane.xlu0 %2510
        %v2512 = vsel %vm376, %v2492, 0.0
        %2513 = vadd.xlane.f32.xlu0 %v2512
        %v2514 = vpop.xlane.xlu0 %2513
        %v2515 = vsel %vm376, %v2493, 0.0
        %2516 = vadd.xlane.f32.xlu0 %v2515
        %v2517 = vpop.xlane.xlu0 %2516
        %v2518 = vsel %vm376, %v2494, 0.0
        %2519 = vadd.xlane.f32.xlu0 %v2518
        %v2520 = vpop.xlane.xlu0 %2519
        %v2521 = vsel %vm376, %v2495, 0.0
        %2522 = vadd.xlane.f32.xlu0 %v2521
        %v2523 = vpop.xlane.xlu0 %2522
        %v2524 = vsel %vm376, %v2496, 0.0
        %2525 = vadd.xlane.f32.xlu0 %v2524
        %v2526 = vpop.xlane.xlu0 %2525
        %v2527 = vsel %vm376, %v2497, 0.0
        %2528 = vadd.xlane.f32.xlu0 %v2527
        %v2529 = vpop.xlane.xlu0 %2528
        %v2530 = vsel %vm376, %v2498, 0.0
        %2531 = vadd.xlane.f32.xlu0 %v2530
        %v2532 = vpop.xlane.xlu0 %2531
        %v2533 = vsel %vm376, %v2499, 0.0
        %2534 = vadd.xlane.f32.xlu0 %v2533
        %v2535 = vpop.xlane.xlu0 %2534
        %v2536 = vsel %vm376, %v2500, 0.0
        %2537 = vadd.xlane.f32.xlu0 %v2536
        %v2538 = vpop.xlane.xlu0 %2537
        %v2539 = vsel %vm376, %v2501, 0.0
        %2540 = vadd.xlane.f32.xlu0 %v2539
        %v2541 = vpop.xlane.xlu0 %2540
        %v2542 = vsel %vm376, %v2502, 0.0
        %2543 = vadd.xlane.f32.xlu0 %v2542
        %v2544 = vpop.xlane.xlu0 %2543
        %v2545 = vsel %vm376, %v2503, 0.0
        %2546 = vadd.xlane.f32.xlu0 %v2545
        %v2547 = vpop.xlane.xlu0 %2546
        %v2548 = vsel %vm376, %v2504, 0.0
        %2549 = vadd.xlane.f32.xlu0 %v2548
        %v2550 = vpop.xlane.xlu0 %2549
        %v2551 = vsel %vm376, %v2505, 0.0
        %2552 = vadd.xlane.f32.xlu0 %v2551
        %v2553 = vpop.xlane.xlu0 %2552
        %v2570 = vlaneseq
        %v2571 = vshrl.u32 %v2570, 7
        %v2572 = vsub.s32 %v264, %v2571
        %v2573 = vrot.slane %v2508, %v2572
        %v2574 = vlaneseq
        %v2575 = vshrl.u32 %v2574, 7
        %v2576 = vsub.s32 %v445, %v2575
        %v2577 = vrot.slane %v2511, %v2576
        %v2578 = vsel %vm450, %v2577, %v2573
        %v2579 = vlaneseq
        %v2580 = vshrl.u32 %v2579, 7
        %v2581 = vsub.s32 %v264, %v2580
        %v2582 = vrot.slane %v2514, %v2581
        %v2583 = vlaneseq
        %v2584 = vshrl.u32 %v2583, 7
        %v2585 = vsub.s32 %v445, %v2584
        %v2586 = vrot.slane %v2517, %v2585
        %v2587 = vsel %vm450, %v2586, %v2582
        %v2588 = vlaneseq
        %v2589 = vshrl.u32 %v2588, 7
        %v2590 = vsub.s32 %v264, %v2589
        %v2591 = vrot.slane %v2520, %v2590
        %v2592 = vlaneseq
        %v2593 = vshrl.u32 %v2592, 7
        %v2594 = vsub.s32 %v445, %v2593
        %v2595 = vrot.slane %v2523, %v2594
        %v2596 = vsel %vm450, %v2595, %v2591
        %v2597 = vlaneseq
        %v2598 = vshrl.u32 %v2597, 7
        %v2599 = vsub.s32 %v264, %v2598
        %v2600 = vrot.slane %v2526, %v2599
        %v2601 = vlaneseq
        %v2602 = vshrl.u32 %v2601, 7
        %v2603 = vsub.s32 %v445, %v2602
        %v2604 = vrot.slane %v2529, %v2603
        %v2605 = vsel %vm450, %v2604, %v2600
        %v2606 = vlaneseq
        %v2607 = vshrl.u32 %v2606, 7
        %v2608 = vsub.s32 %v264, %v2607
        %v2609 = vrot.slane %v2532, %v2608
        %v2610 = vlaneseq
        %v2611 = vshrl.u32 %v2610, 7
        %v2612 = vsub.s32 %v445, %v2611
        %v2613 = vrot.slane %v2535, %v2612
        %v2614 = vsel %vm450, %v2613, %v2609
        %v2615 = vlaneseq
        %v2616 = vshrl.u32 %v2615, 7
        %v2617 = vsub.s32 %v264, %v2616
        %v2618 = vrot.slane %v2538, %v2617
        %v2619 = vlaneseq
        %v2620 = vshrl.u32 %v2619, 7
        %v2621 = vsub.s32 %v445, %v2620
        %v2622 = vrot.slane %v2541, %v2621
        %v2623 = vsel %vm450, %v2622, %v2618
        %v2624 = vlaneseq
        %v2625 = vshrl.u32 %v2624, 7
        %v2626 = vsub.s32 %v264, %v2625
        %v2627 = vrot.slane %v2544, %v2626
        %v2628 = vlaneseq
        %v2629 = vshrl.u32 %v2628, 7
        %v2630 = vsub.s32 %v445, %v2629
        %v2631 = vrot.slane %v2547, %v2630
        %v2632 = vsel %vm450, %v2631, %v2627
        %v2633 = vlaneseq
        %v2634 = vshrl.u32 %v2633, 7
        %v2635 = vsub.s32 %v264, %v2634
        %v2636 = vrot.slane %v2550, %v2635
        %v2637 = vlaneseq
        %v2638 = vshrl.u32 %v2637, 7
        %v2639 = vsub.s32 %v445, %v2638
        %v2640 = vrot.slane %v2553, %v2639
        %v2641 = vsel %vm450, %v2640, %v2636
        %v2642 = vsel %vm515, %v2587, %v2578
        %v2643 = vsel %vm517, %v2596, %v2642
        %v2644 = vsel %vm519, %v2605, %v2643
        %v2645 = vsel %vm521, %v2614, %v2644
        %v2646 = vsel %vm523, %v2623, %v2645
        %v2647 = vsel %vm525, %v2632, %v2646
        %v2648 = vsel %vm527, %v2641, %v2647
        %v2650 = vsub.f32 %v261, %v2648
        %v2651 = vand.u32 2147483647, %v2650
        %v2652 = vsel %vm376, %v2651, 0.0
        %2653 = vadd.xlane.f32.xlu0 %v2652
        %v2654 = vpop.xlane.xlu0 %2653
        %v2655 = vrot.slane %v2654, 4
        %v2656 = vadd.f32 %v2654, %v2655
        %v2657 = vrot.slane %v2656, 2
        %v2658 = vadd.f32 %v2656, %v2657
        %v2659 = vrot.slane %v2658, 1
        %v2660 = vadd.f32 %v2658, %v2659
        %s2661 = vtos %v2660
        %v2662 = vmul.f32 %v2650, %v262
        %v2663 = vadd.f32 %v2399, %v2662
        %v2664 = vsel %vm268, %v2663, 0.0
        %v2666 = vcombine.high %v2664, %v2664
        %v2668 = vunpack.c.l.s4 1966171168
        %v2669 = vunpack.c.0.s8 %v2668
        %v2670 = vlaneseq
        %v2671 = vshrl.u32 %v2670, 7
        %v2672 = vsub.s32 %v2669, %v2671
        %v2673 = vrot.slane %v2664, %v2672
        %v2675 = vunpack.c.l.s4 1966171168
        %v2676 = vunpack.c.0.s8 %v2675
        %v2677 = vlaneseq
        %v2678 = vshrl.u32 %v2677, 7
        %v2679 = vsub.s32 %v2676, %v2678
        %v2680 = vrot.slane %v2666, %v2679
        %v2681 = vcombine.high %v2673, %v2673
        %v2682 = vcombine.high %v2680, %v2680
        %v2684 = vunpack.c.l.s4 1966171168
        %v2685 = vunpack.c.0.s8 %v2684
        %v2686 = vlaneseq
        %v2687 = vshrl.u32 %v2686, 7
        %v2688 = vsub.s32 %v2685, %v2687
        %v2689 = vrot.slane %v2673, %v2688
        %v2691 = vunpack.c.l.s4 1966171168
        %v2692 = vunpack.c.0.s8 %v2691
        %v2693 = vlaneseq
        %v2694 = vshrl.u32 %v2693, 7
        %v2695 = vsub.s32 %v2692, %v2694
        %v2696 = vrot.slane %v2680, %v2695
        %v2698 = vunpack.c.l.s4 1966171168
        %v2699 = vunpack.c.0.s8 %v2698
        %v2700 = vlaneseq
        %v2701 = vshrl.u32 %v2700, 7
        %v2702 = vsub.s32 %v2699, %v2701
        %v2703 = vrot.slane %v2681, %v2702
        %v2705 = vunpack.c.l.s4 1966171168
        %v2706 = vunpack.c.0.s8 %v2705
        %v2707 = vlaneseq
        %v2708 = vshrl.u32 %v2707, 7
        %v2709 = vsub.s32 %v2706, %v2708
        %v2710 = vrot.slane %v2682, %v2709
        %v2711 = vcombine.high %v2689, %v2689
        %v2712 = vcombine.high %v2696, %v2696
        %v2713 = vcombine.high %v2703, %v2703
        %v2714 = vcombine.high %v2710, %v2710
        %v2715 = vlaneseq
        %v2716 = vshrl.u32 %v2715, 7
        %v2717 = vsub.s32 0, %v2716
        %v2718 = vrot.slane %v2689, %v2717
        %v2719 = vlaneseq
        %v2720 = vshrl.u32 %v2719, 7
        %v2721 = vsub.s32 0, %v2720
        %v2722 = vrot.slane %v2703, %v2721
        %v2723 = vlaneseq
        %v2724 = vshrl.u32 %v2723, 7
        %v2725 = vsub.s32 0, %v2724
        %v2726 = vrot.slane %v2711, %v2725
        %v2727 = vlaneseq
        %v2728 = vshrl.u32 %v2727, 7
        %v2729 = vsub.s32 0, %v2728
        %v2730 = vrot.slane %v2713, %v2729
        %v2731 = vlaneseq
        %v2732 = vshrl.u32 %v2731, 7
        %v2733 = vsub.s32 0, %v2732
        %v2734 = vrot.slane %v2696, %v2733
        %v2735 = vlaneseq
        %v2736 = vshrl.u32 %v2735, 7
        %v2737 = vsub.s32 0, %v2736
        %v2738 = vrot.slane %v2710, %v2737
        %v2739 = vlaneseq
        %v2740 = vshrl.u32 %v2739, 7
        %v2741 = vsub.s32 0, %v2740
        %v2742 = vrot.slane %v2712, %v2741
        %v2743 = vlaneseq
        %v2744 = vshrl.u32 %v2743, 7
        %v2745 = vsub.s32 0, %v2744
        %v2746 = vrot.slane %v2714, %v2745
        %v2755 = vmul.f32 %v245, %v2718
        %v2756 = vmul.f32 %v246, %v2718
        %v2757 = vmul.f32 %v247, %v2722
        %v2758 = vmul.f32 %v248, %v2722
        %v2759 = vmul.f32 %v249, %v2726
        %v2760 = vmul.f32 %v250, %v2726
        %v2761 = vmul.f32 %v251, %v2730
        %v2762 = vmul.f32 %v252, %v2730
        %v2763 = vmul.f32 %v253, %v2734
        %v2764 = vmul.f32 %v254, %v2734
        %v2765 = vmul.f32 %v255, %v2738
        %v2766 = vmul.f32 %v256, %v2738
        %v2767 = vmul.f32 %v257, %v2742
        %v2768 = vmul.f32 %v258, %v2742
        %v2769 = vmul.f32 %v259, %v2746
        %v2770 = vmul.f32 %v260, %v2746
        %v2771 = vsel %vm376, %v2755, 0.0
        %2772 = vadd.xlane.f32.xlu0 %v2771
        %v2773 = vpop.xlane.xlu0 %2772
        %v2774 = vsel %vm376, %v2756, 0.0
        %2775 = vadd.xlane.f32.xlu0 %v2774
        %v2776 = vpop.xlane.xlu0 %2775
        %v2777 = vsel %vm376, %v2757, 0.0
        %2778 = vadd.xlane.f32.xlu0 %v2777
        %v2779 = vpop.xlane.xlu0 %2778
        %v2780 = vsel %vm376, %v2758, 0.0
        %2781 = vadd.xlane.f32.xlu0 %v2780
        %v2782 = vpop.xlane.xlu0 %2781
        %v2783 = vsel %vm376, %v2759, 0.0
        %2784 = vadd.xlane.f32.xlu0 %v2783
        %v2785 = vpop.xlane.xlu0 %2784
        %v2786 = vsel %vm376, %v2760, 0.0
        %2787 = vadd.xlane.f32.xlu0 %v2786
        %v2788 = vpop.xlane.xlu0 %2787
        %v2789 = vsel %vm376, %v2761, 0.0
        %2790 = vadd.xlane.f32.xlu0 %v2789
        %v2791 = vpop.xlane.xlu0 %2790
        %v2792 = vsel %vm376, %v2762, 0.0
        %2793 = vadd.xlane.f32.xlu0 %v2792
        %v2794 = vpop.xlane.xlu0 %2793
        %v2795 = vsel %vm376, %v2763, 0.0
        %2796 = vadd.xlane.f32.xlu0 %v2795
        %v2797 = vpop.xlane.xlu0 %2796
        %v2798 = vsel %vm376, %v2764, 0.0
        %2799 = vadd.xlane.f32.xlu0 %v2798
        %v2800 = vpop.xlane.xlu0 %2799
        %v2801 = vsel %vm376, %v2765, 0.0
        %2802 = vadd.xlane.f32.xlu0 %v2801
        %v2803 = vpop.xlane.xlu0 %2802
        %v2804 = vsel %vm376, %v2766, 0.0
        %2805 = vadd.xlane.f32.xlu0 %v2804
        %v2806 = vpop.xlane.xlu0 %2805
        %v2807 = vsel %vm376, %v2767, 0.0
        %2808 = vadd.xlane.f32.xlu0 %v2807
        %v2809 = vpop.xlane.xlu0 %2808
        %v2810 = vsel %vm376, %v2768, 0.0
        %2811 = vadd.xlane.f32.xlu0 %v2810
        %v2812 = vpop.xlane.xlu0 %2811
        %v2813 = vsel %vm376, %v2769, 0.0
        %2814 = vadd.xlane.f32.xlu0 %v2813
        %v2815 = vpop.xlane.xlu0 %2814
        %v2816 = vsel %vm376, %v2770, 0.0
        %2817 = vadd.xlane.f32.xlu0 %v2816
        %v2818 = vpop.xlane.xlu0 %2817
        %v2835 = vlaneseq
        %v2836 = vshrl.u32 %v2835, 7
        %v2837 = vsub.s32 %v264, %v2836
        %v2838 = vrot.slane %v2773, %v2837
        %v2839 = vlaneseq
        %v2840 = vshrl.u32 %v2839, 7
        %v2841 = vsub.s32 %v445, %v2840
        %v2842 = vrot.slane %v2776, %v2841
        %v2843 = vsel %vm450, %v2842, %v2838
        %v2844 = vlaneseq
        %v2845 = vshrl.u32 %v2844, 7
        %v2846 = vsub.s32 %v264, %v2845
        %v2847 = vrot.slane %v2779, %v2846
        %v2848 = vlaneseq
        %v2849 = vshrl.u32 %v2848, 7
        %v2850 = vsub.s32 %v445, %v2849
        %v2851 = vrot.slane %v2782, %v2850
        %v2852 = vsel %vm450, %v2851, %v2847
        %v2853 = vlaneseq
        %v2854 = vshrl.u32 %v2853, 7
        %v2855 = vsub.s32 %v264, %v2854
        %v2856 = vrot.slane %v2785, %v2855
        %v2857 = vlaneseq
        %v2858 = vshrl.u32 %v2857, 7
        %v2859 = vsub.s32 %v445, %v2858
        %v2860 = vrot.slane %v2788, %v2859
        %v2861 = vsel %vm450, %v2860, %v2856
        %v2862 = vlaneseq
        %v2863 = vshrl.u32 %v2862, 7
        %v2864 = vsub.s32 %v264, %v2863
        %v2865 = vrot.slane %v2791, %v2864
        %v2866 = vlaneseq
        %v2867 = vshrl.u32 %v2866, 7
        %v2868 = vsub.s32 %v445, %v2867
        %v2869 = vrot.slane %v2794, %v2868
        %v2870 = vsel %vm450, %v2869, %v2865
        %v2871 = vlaneseq
        %v2872 = vshrl.u32 %v2871, 7
        %v2873 = vsub.s32 %v264, %v2872
        %v2874 = vrot.slane %v2797, %v2873
        %v2875 = vlaneseq
        %v2876 = vshrl.u32 %v2875, 7
        %v2877 = vsub.s32 %v445, %v2876
        %v2878 = vrot.slane %v2800, %v2877
        %v2879 = vsel %vm450, %v2878, %v2874
        %v2880 = vlaneseq
        %v2881 = vshrl.u32 %v2880, 7
        %v2882 = vsub.s32 %v264, %v2881
        %v2883 = vrot.slane %v2803, %v2882
        %v2884 = vlaneseq
        %v2885 = vshrl.u32 %v2884, 7
        %v2886 = vsub.s32 %v445, %v2885
        %v2887 = vrot.slane %v2806, %v2886
        %v2888 = vsel %vm450, %v2887, %v2883
        %v2889 = vlaneseq
        %v2890 = vshrl.u32 %v2889, 7
        %v2891 = vsub.s32 %v264, %v2890
        %v2892 = vrot.slane %v2809, %v2891
        %v2893 = vlaneseq
        %v2894 = vshrl.u32 %v2893, 7
        %v2895 = vsub.s32 %v445, %v2894
        %v2896 = vrot.slane %v2812, %v2895
        %v2897 = vsel %vm450, %v2896, %v2892
        %v2898 = vlaneseq
        %v2899 = vshrl.u32 %v2898, 7
        %v2900 = vsub.s32 %v264, %v2899
        %v2901 = vrot.slane %v2815, %v2900
        %v2902 = vlaneseq
        %v2903 = vshrl.u32 %v2902, 7
        %v2904 = vsub.s32 %v445, %v2903
        %v2905 = vrot.slane %v2818, %v2904
        %v2906 = vsel %vm450, %v2905, %v2901
        %v2907 = vsel %vm515, %v2852, %v2843
        %v2908 = vsel %vm517, %v2861, %v2907
        %v2909 = vsel %vm519, %v2870, %v2908
        %v2910 = vsel %vm521, %v2879, %v2909
        %v2911 = vsel %vm523, %v2888, %v2910
        %v2912 = vsel %vm525, %v2897, %v2911
        %v2913 = vsel %vm527, %v2906, %v2912
        %v2915 = vsub.f32 %v261, %v2913
        %v2916 = vand.u32 2147483647, %v2915
        %v2917 = vsel %vm376, %v2916, 0.0
        %2918 = vadd.xlane.f32.xlu0 %v2917
        %v2919 = vpop.xlane.xlu0 %2918
        %v2920 = vrot.slane %v2919, 4
        %v2921 = vadd.f32 %v2919, %v2920
        %v2922 = vrot.slane %v2921, 2
        %v2923 = vadd.f32 %v2921, %v2922
        %v2924 = vrot.slane %v2923, 1
        %v2925 = vadd.f32 %v2923, %v2924
        %s2926 = vtos %v2925
        %v2927 = vmul.f32 %v2915, %v262
        %v2928 = vadd.f32 %v2664, %v2927
        %v2929 = vsel %vm268, %v2928, 0.0
        %v2931 = vcombine.high %v2929, %v2929
        %v2933 = vunpack.c.l.s4 1966171168
        %v2934 = vunpack.c.0.s8 %v2933
        %v2935 = vlaneseq
        %v2936 = vshrl.u32 %v2935, 7
        %v2937 = vsub.s32 %v2934, %v2936
        %v2938 = vrot.slane %v2929, %v2937
        %v2940 = vunpack.c.l.s4 1966171168
        %v2941 = vunpack.c.0.s8 %v2940
        %v2942 = vlaneseq
        %v2943 = vshrl.u32 %v2942, 7
        %v2944 = vsub.s32 %v2941, %v2943
        %v2945 = vrot.slane %v2931, %v2944
        %v2946 = vcombine.high %v2938, %v2938
        %v2947 = vcombine.high %v2945, %v2945
        %v2949 = vunpack.c.l.s4 1966171168
        %v2950 = vunpack.c.0.s8 %v2949
        %v2951 = vlaneseq
        %v2952 = vshrl.u32 %v2951, 7
        %v2953 = vsub.s32 %v2950, %v2952
        %v2954 = vrot.slane %v2938, %v2953
        %v2956 = vunpack.c.l.s4 1966171168
        %v2957 = vunpack.c.0.s8 %v2956
        %v2958 = vlaneseq
        %v2959 = vshrl.u32 %v2958, 7
        %v2960 = vsub.s32 %v2957, %v2959
        %v2961 = vrot.slane %v2945, %v2960
        %v2963 = vunpack.c.l.s4 1966171168
        %v2964 = vunpack.c.0.s8 %v2963
        %v2965 = vlaneseq
        %v2966 = vshrl.u32 %v2965, 7
        %v2967 = vsub.s32 %v2964, %v2966
        %v2968 = vrot.slane %v2946, %v2967
        %v2970 = vunpack.c.l.s4 1966171168
        %v2971 = vunpack.c.0.s8 %v2970
        %v2972 = vlaneseq
        %v2973 = vshrl.u32 %v2972, 7
        %v2974 = vsub.s32 %v2971, %v2973
        %v2975 = vrot.slane %v2947, %v2974
        %v2976 = vcombine.high %v2954, %v2954
        %v2977 = vcombine.high %v2961, %v2961
        %v2978 = vcombine.high %v2968, %v2968
        %v2979 = vcombine.high %v2975, %v2975
        %v2980 = vlaneseq
        %v2981 = vshrl.u32 %v2980, 7
        %v2982 = vsub.s32 0, %v2981
        %v2983 = vrot.slane %v2954, %v2982
        %v2984 = vlaneseq
        %v2985 = vshrl.u32 %v2984, 7
        %v2986 = vsub.s32 0, %v2985
        %v2987 = vrot.slane %v2968, %v2986
        %v2988 = vlaneseq
        %v2989 = vshrl.u32 %v2988, 7
        %v2990 = vsub.s32 0, %v2989
        %v2991 = vrot.slane %v2976, %v2990
        %v2992 = vlaneseq
        %v2993 = vshrl.u32 %v2992, 7
        %v2994 = vsub.s32 0, %v2993
        %v2995 = vrot.slane %v2978, %v2994
        %v2996 = vlaneseq
        %v2997 = vshrl.u32 %v2996, 7
        %v2998 = vsub.s32 0, %v2997
        %v2999 = vrot.slane %v2961, %v2998
        %v3000 = vlaneseq
        %v3001 = vshrl.u32 %v3000, 7
        %v3002 = vsub.s32 0, %v3001
        %v3003 = vrot.slane %v2975, %v3002
        %v3004 = vlaneseq
        %v3005 = vshrl.u32 %v3004, 7
        %v3006 = vsub.s32 0, %v3005
        %v3007 = vrot.slane %v2977, %v3006
        %v3008 = vlaneseq
        %v3009 = vshrl.u32 %v3008, 7
        %v3010 = vsub.s32 0, %v3009
        %v3011 = vrot.slane %v2979, %v3010
        %v3020 = vmul.f32 %v245, %v2983
        %v3021 = vmul.f32 %v246, %v2983
        %v3022 = vmul.f32 %v247, %v2987
        %v3023 = vmul.f32 %v248, %v2987
        %v3024 = vmul.f32 %v249, %v2991
        %v3025 = vmul.f32 %v250, %v2991
        %v3026 = vmul.f32 %v251, %v2995
        %v3027 = vmul.f32 %v252, %v2995
        %v3028 = vmul.f32 %v253, %v2999
        %v3029 = vmul.f32 %v254, %v2999
        %v3030 = vmul.f32 %v255, %v3003
        %v3031 = vmul.f32 %v256, %v3003
        %v3032 = vmul.f32 %v257, %v3007
        %v3033 = vmul.f32 %v258, %v3007
        %v3034 = vmul.f32 %v259, %v3011
        %v3035 = vmul.f32 %v260, %v3011
        %v3036 = vsel %vm376, %v3020, 0.0
        %3037 = vadd.xlane.f32.xlu0 %v3036
        %v3038 = vpop.xlane.xlu0 %3037
        %v3039 = vsel %vm376, %v3021, 0.0
        %3040 = vadd.xlane.f32.xlu0 %v3039
        %v3041 = vpop.xlane.xlu0 %3040
        %v3042 = vsel %vm376, %v3022, 0.0
        %3043 = vadd.xlane.f32.xlu0 %v3042
        %v3044 = vpop.xlane.xlu0 %3043
        %v3045 = vsel %vm376, %v3023, 0.0
        %3046 = vadd.xlane.f32.xlu0 %v3045
        %v3047 = vpop.xlane.xlu0 %3046
        %v3048 = vsel %vm376, %v3024, 0.0
        %3049 = vadd.xlane.f32.xlu0 %v3048
        %v3050 = vpop.xlane.xlu0 %3049
        %v3051 = vsel %vm376, %v3025, 0.0
        %3052 = vadd.xlane.f32.xlu0 %v3051
        %v3053 = vpop.xlane.xlu0 %3052
        %v3054 = vsel %vm376, %v3026, 0.0
        %3055 = vadd.xlane.f32.xlu0 %v3054
        %v3056 = vpop.xlane.xlu0 %3055
        %v3057 = vsel %vm376, %v3027, 0.0
        %3058 = vadd.xlane.f32.xlu0 %v3057
        %v3059 = vpop.xlane.xlu0 %3058
        %v3060 = vsel %vm376, %v3028, 0.0
        %3061 = vadd.xlane.f32.xlu0 %v3060
        %v3062 = vpop.xlane.xlu0 %3061
        %v3063 = vsel %vm376, %v3029, 0.0
        %3064 = vadd.xlane.f32.xlu0 %v3063
        %v3065 = vpop.xlane.xlu0 %3064
        %v3066 = vsel %vm376, %v3030, 0.0
        %3067 = vadd.xlane.f32.xlu0 %v3066
        %v3068 = vpop.xlane.xlu0 %3067
        %v3069 = vsel %vm376, %v3031, 0.0
        %3070 = vadd.xlane.f32.xlu0 %v3069
        %v3071 = vpop.xlane.xlu0 %3070
        %v3072 = vsel %vm376, %v3032, 0.0
        %3073 = vadd.xlane.f32.xlu0 %v3072
        %v3074 = vpop.xlane.xlu0 %3073
        %v3075 = vsel %vm376, %v3033, 0.0
        %3076 = vadd.xlane.f32.xlu0 %v3075
        %v3077 = vpop.xlane.xlu0 %3076
        %v3078 = vsel %vm376, %v3034, 0.0
        %3079 = vadd.xlane.f32.xlu0 %v3078
        %v3080 = vpop.xlane.xlu0 %3079
        %v3081 = vsel %vm376, %v3035, 0.0
        %3082 = vadd.xlane.f32.xlu0 %v3081
        %v3083 = vpop.xlane.xlu0 %3082
        %v3100 = vlaneseq
        %v3101 = vshrl.u32 %v3100, 7
        %v3102 = vsub.s32 %v264, %v3101
        %v3103 = vrot.slane %v3038, %v3102
        %v3104 = vlaneseq
        %v3105 = vshrl.u32 %v3104, 7
        %v3106 = vsub.s32 %v445, %v3105
        %v3107 = vrot.slane %v3041, %v3106
        %v3108 = vsel %vm450, %v3107, %v3103
        %v3109 = vlaneseq
        %v3110 = vshrl.u32 %v3109, 7
        %v3111 = vsub.s32 %v264, %v3110
        %v3112 = vrot.slane %v3044, %v3111
        %v3113 = vlaneseq
        %v3114 = vshrl.u32 %v3113, 7
        %v3115 = vsub.s32 %v445, %v3114
        %v3116 = vrot.slane %v3047, %v3115
        %v3117 = vsel %vm450, %v3116, %v3112
        %v3118 = vlaneseq
        %v3119 = vshrl.u32 %v3118, 7
        %v3120 = vsub.s32 %v264, %v3119
        %v3121 = vrot.slane %v3050, %v3120
        %v3122 = vlaneseq
        %v3123 = vshrl.u32 %v3122, 7
        %v3124 = vsub.s32 %v445, %v3123
        %v3125 = vrot.slane %v3053, %v3124
        %v3126 = vsel %vm450, %v3125, %v3121
        %v3127 = vlaneseq
        %v3128 = vshrl.u32 %v3127, 7
        %v3129 = vsub.s32 %v264, %v3128
        %v3130 = vrot.slane %v3056, %v3129
        %v3131 = vlaneseq
        %v3132 = vshrl.u32 %v3131, 7
        %v3133 = vsub.s32 %v445, %v3132
        %v3134 = vrot.slane %v3059, %v3133
        %v3135 = vsel %vm450, %v3134, %v3130
        %v3136 = vlaneseq
        %v3137 = vshrl.u32 %v3136, 7
        %v3138 = vsub.s32 %v264, %v3137
        %v3139 = vrot.slane %v3062, %v3138
        %v3140 = vlaneseq
        %v3141 = vshrl.u32 %v3140, 7
        %v3142 = vsub.s32 %v445, %v3141
        %v3143 = vrot.slane %v3065, %v3142
        %v3144 = vsel %vm450, %v3143, %v3139
        %v3145 = vlaneseq
        %v3146 = vshrl.u32 %v3145, 7
        %v3147 = vsub.s32 %v264, %v3146
        %v3148 = vrot.slane %v3068, %v3147
        %v3149 = vlaneseq
        %v3150 = vshrl.u32 %v3149, 7
        %v3151 = vsub.s32 %v445, %v3150
        %v3152 = vrot.slane %v3071, %v3151
        %v3153 = vsel %vm450, %v3152, %v3148
        %v3154 = vlaneseq
        %v3155 = vshrl.u32 %v3154, 7
        %v3156 = vsub.s32 %v264, %v3155
        %v3157 = vrot.slane %v3074, %v3156
        %v3158 = vlaneseq
        %v3159 = vshrl.u32 %v3158, 7
        %v3160 = vsub.s32 %v445, %v3159
        %v3161 = vrot.slane %v3077, %v3160
        %v3162 = vsel %vm450, %v3161, %v3157
        %v3163 = vlaneseq
        %v3164 = vshrl.u32 %v3163, 7
        %v3165 = vsub.s32 %v264, %v3164
        %v3166 = vrot.slane %v3080, %v3165
        %v3167 = vlaneseq
        %v3168 = vshrl.u32 %v3167, 7
        %v3169 = vsub.s32 %v445, %v3168
        %v3170 = vrot.slane %v3083, %v3169
        %v3171 = vsel %vm450, %v3170, %v3166
        %v3172 = vsel %vm515, %v3117, %v3108
        %v3173 = vsel %vm517, %v3126, %v3172
        %v3174 = vsel %vm519, %v3135, %v3173
        %v3175 = vsel %vm521, %v3144, %v3174
        %v3176 = vsel %vm523, %v3153, %v3175
        %v3177 = vsel %vm525, %v3162, %v3176
        %v3178 = vsel %vm527, %v3171, %v3177
        %v3180 = vsub.f32 %v261, %v3178
        %v3181 = vand.u32 2147483647, %v3180
        %v3182 = vsel %vm376, %v3181, 0.0
        %3183 = vadd.xlane.f32.xlu0 %v3182
        %v3184 = vpop.xlane.xlu0 %3183
        %v3185 = vrot.slane %v3184, 4
        %v3186 = vadd.f32 %v3184, %v3185
        %v3187 = vrot.slane %v3186, 2
        %v3188 = vadd.f32 %v3186, %v3187
        %v3189 = vrot.slane %v3188, 1
        %v3190 = vadd.f32 %v3188, %v3189
        %s3191 = vtos %v3190
        %3192 = vst.msk [vmem:[%s244] sm:$0xff] %vm376, %v2929
        %vm3193 = vcmp.eq.s32.totalorder %v264, 0
        %v3194 = vstv %s541
        %v3195 = vsel %vm3193, %v3194, 0.0
        %vm3196 = vcmp.eq.s32.totalorder %v264, 1
        %v3197 = vstv %s806
        %v3198 = vsel %vm3196, %v3197, %v3195
        %vm3199 = vcmp.eq.s32.totalorder %v264, 2
        %v3200 = vstv %s1071
        %v3201 = vsel %vm3199, %v3200, %v3198
        %vm3202 = vcmp.eq.s32.totalorder %v264, 3
        %v3203 = vstv %s1336
        %v3204 = vsel %vm3202, %v3203, %v3201
        %vm3205 = vcmp.eq.s32.totalorder %v264, 4
        %v3206 = vstv %s1601
        %v3207 = vsel %vm3205, %v3206, %v3204
        %vm3208 = vcmp.eq.s32.totalorder %v264, 5
        %v3209 = vstv %s1866
        %v3210 = vsel %vm3208, %v3209, %v3207
        %vm3211 = vcmp.eq.s32.totalorder %v264, 6
        %v3212 = vstv %s2131
        %v3213 = vsel %vm3211, %v3212, %v3210
        %vm3214 = vcmp.eq.s32.totalorder %v264, 7
        %v3215 = vstv %s2396
        %v3216 = vsel %vm3214, %v3215, %v3213
        %vm3217 = vcmp.eq.s32.totalorder %v264, 8
        %v3218 = vstv %s2661
        %v3219 = vsel %vm3217, %v3218, %v3216
        %vm3220 = vcmp.eq.s32.totalorder %v264, 9
        %v3221 = vstv %s2926
        %v3222 = vsel %vm3220, %v3221, %v3219
        %vm3223 = vcmp.eq.s32.totalorder %v264, 10
        %v3224 = vstv %s3191
        %v3225 = vsel %vm3223, %v3224, %v3222
        %vm3226 = vcmask 81920
        %3227 = vst.msk [vmem:[%s225] sm:$0x1] %vm3226, %v3225
        %p3228 = scmp.lt.s32.totalorder %s19, 3
        %s3229 = scalar_select %p3228, %s19, 3
        %s3230 = smul.addr %s3229, 8
        %s3231 = scalar_lea.vmem %s3, %s3230
        %s3232 = sand.u32 %s131, 1
        %s3233 = scalar_lea.sflag [#allocation3], %s3232
        %s3234 = sand.u32 %s131, 1
        %s3235 = scalar_lea.vmem [#allocation2], %s3234
        // Predicated region
        $region33: #{tpu_custom_call.1} parent=31 // pred_check
          %p3236 = pneg %p115
        $region34: #{tpu_custom_call.1} parent=31 // pred_check_branch
          %3238 = sbr.rel (%p3236) target = $region36
        $region35: #{tpu_custom_call.1} parent=31 // pred_region
          _
        $region36: #{tpu_custom_call.1} parent=31 // pred_fallthru
          _
        // Predicated region
        $region37: #{tpu_custom_call.1} parent=31 // pred_check
          %p3239 = pneg %p141
        $region38: #{tpu_custom_call.1} parent=31 // pred_check_branch
          %3241 = sbr.rel (%p3239) target = $region40
        $region39: #{tpu_custom_call.1} parent=31 // pred_region
          %s3243 = ssub.s32 16, 16
          %3244 = vsyncadd %s3233, %s3243
          %s3245 = smul.addr %s19, 16
          %s3246 = scalar_lea.hbm %s4, %s3245
          %s3248 = sshll.u32 %s3235, 4
          %s3249 = int_to_ptr.vmem [resolvable:$true] %s3248
          %3251 = dma.vmem_to_hbm [thread:$0]  %s3249, 16, %s3246, %s3233
        $region40: #{tpu_custom_call.1} parent=31 // pred_fallthru
          _
      $region32: #{tpu_custom_call.1} parent=5 // pred_fallthru
        _
      %p3252 = scmp.le.s32.totalorder 2, %s14
      // Predicated region
      $region41: #{tpu_custom_call.1} parent=5 // pred_check
        %p3253 = pneg %p3252
      $region42: #{tpu_custom_call.1} parent=5 // pred_check_branch
        %3255 = sbr.rel (%p3253) target = $region44
      $region43: #{tpu_custom_call.1} parent=5 // pred_region
        %s3256 = ssub.s32 %s14, 2
        // Predicated region
        $region45: #{tpu_custom_call.1} parent=43 // pred_check
          %p3257 = pneg %p121
        $region46: #{tpu_custom_call.1} parent=43 // pred_check_branch
          %3259 = sbr.rel (%p3257) target = $region48
        $region47: #{tpu_custom_call.1} parent=43 // pred_region
          %p3260 = scmp.lt.s32.totalorder %s20, 3
          %s3261 = scalar_select %p3260, %s20, 3
          %s3262 = smul.addr %s3261, 8
          %s3263 = scalar_lea.vmem %s3, %s3262
        $region48: #{tpu_custom_call.1} parent=43 // pred_fallthru
          _
        // Predicated region
        $region49: #{tpu_custom_call.1} parent=43 // pred_check
          %p3264 = pneg %p147
        $region50: #{tpu_custom_call.1} parent=43 // pred_check_branch
          %3266 = sbr.rel (%p3264) target = $region52
        $region51: #{tpu_custom_call.1} parent=43 // pred_region
          %s3267 = sand.u32 %s132, 1
          %s3268 = scalar_lea.sflag [#allocation3], %s3267
          %s3269 = sand.u32 %s132, 1
          %s3270 = scalar_lea.vmem [#allocation2], %s3269
          %3271 = dma.done %s3268, 16
        $region52: #{tpu_custom_call.1} parent=43 // pred_fallthru
          _
      $region44: #{tpu_custom_call.1} parent=5 // pred_fallthru
        _
    $region6: #{tpu_custom_call.1} parent=1 // loop_footer
      %s18 = sadd.s32 1, %s14
    $region7: #{tpu_custom_call.1} parent=1 // loop_footer_branch
      %13 = sbr.rel target = $region3
    $region8: #{tpu_custom_call.1} parent=1 // loop_exit
      _
    %3272 = vsyncpa [#allocation3], 1
    %s3273 = scalar_lea.sflag [#allocation3], 1
    %3274 = vsyncpa %s3273, 1

</llo_original>
